<compile_context>
chip_gen: v6e
topology: v6e:2x2x1
jax: 0.10.0
libtpu: 0.0.40
codegen_flags: <defaults>
</compile_context>

<pallas_src>
import functools

import jax
import jax.numpy as jnp
from jax.experimental import pallas as pl
from jax.experimental.pallas import tpu as pltpu

HIDDEN = 100
HIDDEN_PAD = 128   # 100 -> 128: lane-aligned hidden dimension
OUT = 2


def _round_up(n, m):
    return ((n + m - 1) // m) * m


def _mlp_kernel(x_ref, w1_ref, b1_ref, w2_ref, b2_ref, o_ref):
    # x_ref : (TILE_B, D)         native dtype (f32 here)
    # w1_ref: (D, HIDDEN_PAD)     bf16
    # b1_ref: (1, HIDDEN_PAD)     f32
    # w2_ref: (HIDDEN_PAD, OUT)   bf16
    # b2_ref: (1, OUT)            f32
    # o_ref : (TILE_B, OUT)       f32
    x = x_ref[...].astype(w1_ref.dtype)                 # VPU cast, right before MXU
    h = jnp.dot(x, w1_ref[...], preferred_element_type=jnp.float32)
    h = jnp.maximum(h + b1_ref[...], 0.0)               # f32 bias + ReLU (VPU)
    y = jnp.dot(h.astype(w2_ref.dtype), w2_ref[...],
                preferred_element_type=jnp.float32)
    o_ref[...] = (y + b2_ref[...]).astype(o_ref.dtype)


def prepare_params(w1, b1, w2, b2, compute_dtype=jnp.bfloat16):
    """One-time parameter prep (hoisted out of the per-call hot path).

    Inputs are in PyTorch nn.Linear layout:
      w1: (HIDDEN, D), b1: (HIDDEN,), w2: (OUT, HIDDEN), b2: (OUT,)
    Returns weights pre-transposed to (in_features, out_features), hidden dim
    zero-padded 100 -> 128, weights in `compute_dtype`, biases in f32.
    """
    d = w1.shape[1]
    w1t = jnp.zeros((d, HIDDEN_PAD), compute_dtype)
    w1t = w1t.at[:, :HIDDEN].set(jnp.transpose(w1).astype(compute_dtype))
    b1p = jnp.zeros((1, HIDDEN_PAD), jnp.float32)
    b1p = b1p.at[:, :HIDDEN].set(b1.astype(jnp.float32))
    w2t = jnp.zeros((HIDDEN_PAD, OUT), compute_dtype)
    w2t = w2t.at[:HIDDEN, :].set(jnp.transpose(w2).astype(compute_dtype))
    b2p = b2.reshape(1, OUT).astype(jnp.float32)
    return w1t, b1p, w2t, b2p


def _per_row_vmem_bytes(d, x_bytes):
    # double-buffered x blocks + f32 hidden + bf16 hidden copy + 2x output block
    return 2 * d * x_bytes + HIDDEN_PAD * (4 + 2) + 2 * OUT * 4


def _choose_tile(b, d, x_bytes, *, vmem_block_budget=24 << 20, max_tile=16384):
    """Pick a batch tile from a VMEM budget (valid on v5e/v6e/v7x)."""
    per_row = _per_row_vmem_bytes(d, x_bytes)
    tb = vmem_block_budget // per_row
    tb = int(min(max(tb, 512), max_tile))
    if b > 1024:
        # keep >= 2 grid steps so both v7x TensorCores get work
        tb = min(tb, _round_up((b + 1) // 2, 8))
    tb = min(tb, _round_up(b, 8))
    return max(8, _round_up(tb, 8))


def _jnp_forward(x, params):
    """XLA-fused fallback for small batches (same numerics as the kernel)."""
    w1t, b1p, w2t, b2p = params
    h = jnp.dot(x.astype(w1t.dtype), w1t,
                preferred_element_type=jnp.float32) + b1p
    h = jnp.maximum(h, 0.0)
    y = jnp.dot(h.astype(w2t.dtype), w2t,
                preferred_element_type=jnp.float32) + b2p
    return y


@functools.partial(jax.jit, static_argnames=("tile_b", "min_pallas_batch"))
def domain_discriminator(x, params, *, tile_b=None, min_pallas_batch=512):
    """Forward pass for DomainDiscriminator.

    x: (B, D) array, params: output of prepare_params(). Returns (B, 2) f32.
    """
    w1t, b1p, w2t, b2p = params
    B, D = x.shape

    if B < min_pallas_batch:
        # pallas_call launch overhead can't beat XLA fusion at tiny B.
        return _jnp_forward(x, params)

    x_bytes = jnp.dtype(x.dtype).itemsize
    if tile_b is None:
        tb = _choose_tile(B, D, x_bytes)
    else:
        tb = max(8, _round_up(min(int(tile_b), _round_up(B, 8)), 8))

    # VMEM limit: above scoped defaults when the budgeted tile needs it, but
    # capped so it stays inside v7x's 64 MiB physical VMEM.
    param_bytes = (D * HIDDEN_PAD * 2 + HIDDEN_PAD * 4
                   + HIDDEN_PAD * OUT * 2 + OUT * 4)
    est = tb * _per_row_vmem_bytes(D, x_bytes) + param_bytes
    vmem_limit = int(min(48 << 20, max(32 << 20, est + (4 << 20))))

    grid = (pl.cdiv(B, tb),)   # ragged tail handled by the partial last block
    out = pl.pallas_call(
        _mlp_kernel,
        out_shape=jax.ShapeDtypeStruct((B, OUT), jnp.float32),
        grid=grid,
        in_specs=[
            pl.BlockSpec((tb, D), lambda i: (i, 0)),            # x: batch-tiled
            pl.BlockSpec((D, HIDDEN_PAD), lambda i: (0, 0)),    # w1: VMEM-resident
            pl.BlockSpec((1, HIDDEN_PAD), lambda i: (0, 0)),    # b1
            pl.BlockSpec((HIDDEN_PAD, OUT), lambda i: (0, 0)),  # w2
            pl.BlockSpec((1, OUT), lambda i: (0, 0)),           # b2
        ],
        out_specs=pl.BlockSpec((tb, OUT), lambda i: (i, 0)),
        compiler_params=pltpu.CompilerParams(
            dimension_semantics=("parallel",),   # megacore sharding (v7x)
            vmem_limit_bytes=vmem_limit,
        ),
    )(x, w1t, b1p, w2t, b2p)
    return out


def _init_params(key, input_dim, hidden=HIDDEN, out=OUT):
    """Deterministic init mimicking PyTorch nn.Linear defaults (U(+-1/sqrt(fan_in)))."""
    k1, k2, k3, k4 = jax.random.split(key, 4)
    bound1 = 1.0 / jnp.sqrt(jnp.float32(input_dim))
    bound2 = 1.0 / jnp.sqrt(jnp.float32(hidden))
    w1 = jax.random.uniform(k1, (hidden, input_dim), jnp.float32, -bound1, bound1)
    b1 = jax.random.uniform(k2, (hidden,), jnp.float32, -bound1, bound1)
    w2 = jax.random.uniform(k3, (out, hidden), jnp.float32, -bound2, bound2)
    b2 = jax.random.uniform(k4, (out,), jnp.float32, -bound2, bound2)
    return w1, b1, w2, b2


def _reference(x, w1, b1, w2, b2):
    h = jnp.maximum(x @ w1.T + b1, 0.0)
    return h @ w2.T + b2


if __name__ == "__main__":
    key = jax.random.PRNGKey(0)
    k_x, k_x2, k_p = jax.random.split(key, 3)

    input_dim = 32
    w1, b1, w2, b2 = _init_params(k_p, input_dim)
    params = prepare_params(w1, b1, w2, b2)

    # Pallas path: multi-step grid (>=2 steps) + ragged tail (partial last block).
    x_big = jax.random.normal(k_x, (2050, input_dim), jnp.float32)
    y_big = jax.block_until_ready(domain_discriminator(x_big, params))
    assert y_big.shape == (2050, OUT)
    ref_big = _reference(x_big, w1, b1, w2, b2)
    assert jnp.allclose(y_big, ref_big, atol=3e-2, rtol=3e-2), \
        float(jnp.max(jnp.abs(y_big - ref_big)))

    # Small-batch fallback path (XLA-fused, same numerics).
    x_small = jax.random.normal(k_x2, (8, input_dim), jnp.float32)
    y_small = jax.block_until_ready(domain_discriminator(x_small, params))
    assert y_small.shape == (8, OUT)
    assert jnp.allclose(y_small, _reference(x_small, w1, b1, w2, b2),
                        atol=3e-2, rtol=3e-2)

    print("KERNEL_OK")
</pallas_src>

<mosaic_0001>
module attributes {stable_mosaic.version = 11 : i64} {
  func.func @_mlp_kernel(%arg0: i32, %arg1: memref<1032x32xf32, #tpu.memory_space<vmem>>, %arg2: memref<32x128xbf16, #tpu.memory_space<vmem>>, %arg3: memref<1x128xf32, #tpu.memory_space<vmem>>, %arg4: memref<128x2xbf16, #tpu.memory_space<vmem>>, %arg5: memref<1x2xf32, #tpu.memory_space<vmem>>, %arg6: memref<1032x2xf32, #tpu.memory_space<vmem>>) attributes {dimension_semantics = [#tpu.dimension_semantics<parallel>], iteration_bounds = array<i64: 2>, scalar_prefetch = 0 : i64, scratch_operands = 0 : i64, tpu.core_type = #tpu.core_type<tc>, window_params = [{transform_indices = @transform_0, window_bounds = array<i64: 1032, 32>}, {pipeline_mode = #tpu.pipeline_mode<synchronous>, transform_indices = @transform_1, window_bounds = array<i64: 32, 128>}, {pipeline_mode = #tpu.pipeline_mode<synchronous>, transform_indices = @transform_2, window_bounds = array<i64: 1, 128>}, {pipeline_mode = #tpu.pipeline_mode<synchronous>, transform_indices = @transform_3, window_bounds = array<i64: 128, 2>}, {pipeline_mode = #tpu.pipeline_mode<synchronous>, transform_indices = @transform_4, window_bounds = array<i64: 1, 2>}, {transform_indices = @transform_5, window_bounds = array<i64: 1032, 2>}]} {
    %c0 = arith.constant 0 : index
    %c0_0 = arith.constant 0 : index
    %0 = vector.load %arg1[%c0, %c0_0] : memref<1032x32xf32, #tpu.memory_space<vmem>>, vector<1032x32xf32>
    %1 = arith.truncf %0 : vector<1032x32xf32> to vector<1032x32xbf16>
    %c0_1 = arith.constant 0 : index
    %c0_2 = arith.constant 0 : index
    %2 = vector.load %arg2[%c0_1, %c0_2] : memref<32x128xbf16, #tpu.memory_space<vmem>>, vector<32x128xbf16>
    %cst = arith.constant dense<0.000000e+00> : vector<1032x128xf32>
    %3 = tpu.matmul %1, %2, %cst {dimension_numbers = #tpu.dot_dimension_numbers<[1], [0], [0], [1], [0, 0, 1, 1], [], []>} : vector<1032x32xbf16>, vector<32x128xbf16>, vector<1032x128xf32> -> vector<1032x128xf32>
    %c0_3 = arith.constant 0 : index
    %c0_4 = arith.constant 0 : index
    %4 = vector.load %arg3[%c0_3, %c0_4] : memref<1x128xf32, #tpu.memory_space<vmem>>, vector<1x128xf32>
    %5 = vector.broadcast %4 : vector<1x128xf32> to vector<1032x128xf32>
    %6 = arith.addf %3, %5 : vector<1032x128xf32>
    %cst_5 = arith.constant 0.000000e+00 : f32
    %7 = vector.broadcast %cst_5 : f32 to vector<1032x128xf32>
    %8 = arith.maximumf %6, %7 : vector<1032x128xf32>
    %9 = arith.truncf %8 : vector<1032x128xf32> to vector<1032x128xbf16>
    %c0_6 = arith.constant 0 : index
    %c0_7 = arith.constant 0 : index
    %10 = vector.load %arg4[%c0_6, %c0_7] : memref<128x2xbf16, #tpu.memory_space<vmem>>, vector<128x2xbf16>
    %cst_8 = arith.constant dense<0.000000e+00> : vector<1032x2xf32>
    %11 = tpu.matmul %9, %10, %cst_8 {dimension_numbers = #tpu.dot_dimension_numbers<[1], [0], [0], [1], [0, 0, 1, 1], [], []>} : vector<1032x128xbf16>, vector<128x2xbf16>, vector<1032x2xf32> -> vector<1032x2xf32>
    %c0_9 = arith.constant 0 : index
    %c0_10 = arith.constant 0 : index
    %12 = vector.load %arg5[%c0_9, %c0_10] : memref<1x2xf32, #tpu.memory_space<vmem>>, vector<1x2xf32>
    %13 = vector.broadcast %12 : vector<1x2xf32> to vector<1032x2xf32>
    %14 = arith.addf %11, %13 : vector<1032x2xf32>
    %c0_11 = arith.constant 0 : index
    %c0_12 = arith.constant 0 : index
    %15 = vector.load %arg6[%c0_11, %c0_12] : memref<1032x2xf32, #tpu.memory_space<vmem>>, vector<1032x2xf32>
    tpu.vector_store %arg6[%c0_11, %c0_12], %14 {strides = array<i32>} : memref<1032x2xf32, #tpu.memory_space<vmem>>, vector<1032x2xf32>,
    return
  }
  func.func @transform_0(%arg0: i32) -> (i32, i32) {
    %c0_i32 = arith.constant 0 : i32
    %c0_i32_0 = arith.constant 0 : i32
    return %arg0, %c0_i32 : i32, i32
  }
  func.func @transform_1(%arg0: i32) -> (i32, i32) {
    %c0_i32 = arith.constant 0 : i32
    %c0_i32_0 = arith.constant 0 : i32
    %c0_i32_1 = arith.constant 0 : i32
    return %c0_i32, %c0_i32_0 : i32, i32
  }
  func.func @transform_2(%arg0: i32) -> (i32, i32) {
    %c0_i32 = arith.constant 0 : i32
    %c0_i32_0 = arith.constant 0 : i32
    %c0_i32_1 = arith.constant 0 : i32
    return %c0_i32, %c0_i32_0 : i32, i32
  }
  func.func @transform_3(%arg0: i32) -> (i32, i32) {
    %c0_i32 = arith.constant 0 : i32
    %c0_i32_0 = arith.constant 0 : i32
    %c0_i32_1 = arith.constant 0 : i32
    return %c0_i32, %c0_i32_0 : i32, i32
  }
  func.func @transform_4(%arg0: i32) -> (i32, i32) {
    %c0_i32 = arith.constant 0 : i32
    %c0_i32_0 = arith.constant 0 : i32
    %c0_i32_1 = arith.constant 0 : i32
    return %c0_i32, %c0_i32_0 : i32, i32
  }
  func.func @transform_5(%arg0: i32) -> (i32, i32) {
    %c0_i32 = arith.constant 0 : i32
    %c0_i32_0 = arith.constant 0 : i32
    return %arg0, %c0_i32 : i32, i32
  }
}

</mosaic_0001>

<llo_original>
// kernel: domain_discriminator.1
$region0: #{domain_discriminator.1}
  #allocation0 [shape = 'u32[]', space=smem, size = 0x4, offset = 0x4, fixed_abs, tag = 'smem constant byte address 0x4 - core index']
  #allocation1 [shape = 'u32[144,128]{1,0:T(1,128)}', space=vmem, size = 0x12000, scoped, tag = 'internal scratch']
  %s0 = inlined_call_operand.vmem [shape: f32[2050,32], index: 0, kind: input, shape index: {}]
  %s1 = inlined_call_operand.vmem [shape: bf16[32,128], index: 1, kind: input, shape index: {}]
  %s2 = inlined_call_operand.vmem [shape: f32[1,128], index: 2, kind: input, shape index: {}]
  %s3 = inlined_call_operand.vmem [shape: bf16[128,2], index: 3, kind: input, shape index: {}]
  %s4 = inlined_call_operand.vmem [shape: f32[1,2], index: 4, kind: input, shape index: {}]
  %s5 = inlined_call_operand.vmem [shape: f32[2050,2], index: 5, kind: output, shape index: {}]
  %s6 = sld [smem:[#allocation0]]
  $region101: #{domain_discriminator.1} parent=0
    _
  %s8 = ssub.s32 1, %s6
  %s9 = scalar_select 0, %s8, %s6
  $region1: #{domain_discriminator.1} parent=0
    #allocation2 [shape = 'u8[1056768]{0}', space=vmem, size = 0x102000, scoped, tag = 'output window, operand 0']
    loop: start=0, step=1, limit=4
    $region2: #{domain_discriminator.1} parent=1 // loop_pre_header
      _
    $region3: #{domain_discriminator.1} parent=1 // loop_header
      %s11 = sphi 0, %s15
      %p12 = scmp.ge.s32.totalorder %s11, 4
      %s21 = sphi 0, %s23
      %s24 = sphi 0, %s21
      %s25 = sphi 0, %s24
      %s41 = sphi 0, %s25
      %s45 = sphi 0, %s45
      %s47 = sphi 0, %s45
      %s48 = sphi 0, %s47
      %s62 = sphi 0, %s48
      %s66 = sphi 0, %s66
      %s68 = sphi 0, %s66
      %s69 = sphi 0, %s68
      %s83 = sphi 0, %s69
      %s87 = sphi 0, %s87
      %s89 = sphi 0, %s87
      %s90 = sphi 0, %s89
      %s104 = sphi 0, %s90
      %s108 = sphi 0, %s108
      %s110 = sphi 0, %s108
      %s111 = sphi 0, %s110
      %s125 = sphi 0, %s111
      %s131 = sphi 0, %s133
      %s134 = sphi 0, %s131
      %s135 = sphi 0, %s134
      %s151 = sphi 0, %s135
    $region4: #{domain_discriminator.1} parent=1 // loop_header_branch
      %14 = sbr.rel (%p12) target = $region8
    $region5: #{domain_discriminator.1} parent=1 // loop_body
      %s16 = ssub.s32 %s11, 1
      %s17 = ssub.s32 %s11, 2
      %s18 = sadd.s32 %s11, 1
      %s19 = ssub.s32 %s11, %s18
      %p20 = scmp.eq.s32.totalorder %s19, 0
      %s22 = sadd.s32 %s21, 1
      %s23 = scalar_select %p20, %s21, %s22
      %p26 = pneg %p20
      %p27 = scmp.eq.s32.totalorder %s11, 1
      %p28 = por %p26, %p27
      %p29 = scmp.ne.s32.totalorder %s21, %s24
      %p30 = scmp.eq.s32.totalorder %s11, 0
      %p31 = por %p29, %p30
      %p32 = scmp.ne.s32.totalorder %s21, %s24
      %p33 = scmp.eq.s32.totalorder %s16, 1
      %p34 = por %p32, %p33
      %p35 = scmp.ne.s32.totalorder %s24, %s25
      %p36 = scmp.eq.s32.totalorder %s16, 0
      %p37 = por %p35, %p36
      %p38 = scmp.ne.s32.totalorder %s24, %s25
      %p39 = scmp.eq.s32.totalorder %s17, 1
      %p40 = por %p38, %p39
      %p42 = scmp.ne.s32.totalorder %s25, %s41
      %p43 = scmp.eq.s32.totalorder %s17, 0
      %p44 = por %p42, %p43
      %s46 = sadd.s32 %s45, 1
      %p49 = scmp.eq.s32.totalorder %s11, 1
      %p50 = scmp.ne.s32.totalorder %s45, %s47
      %p51 = scmp.eq.s32.totalorder %s11, 0
      %p52 = por %p50, %p51
      %p53 = scmp.ne.s32.totalorder %s45, %s47
      %p54 = scmp.eq.s32.totalorder %s16, 1
      %p55 = por %p53, %p54
      %p56 = scmp.ne.s32.totalorder %s47, %s48
      %p57 = scmp.eq.s32.totalorder %s16, 0
      %p58 = por %p56, %p57
      %p59 = scmp.ne.s32.totalorder %s47, %s48
      %p60 = scmp.eq.s32.totalorder %s17, 1
      %p61 = por %p59, %p60
      %p63 = scmp.ne.s32.totalorder %s48, %s62
      %p64 = scmp.eq.s32.totalorder %s17, 0
      %p65 = por %p63, %p64
      %s67 = sadd.s32 %s66, 1
      %p70 = scmp.eq.s32.totalorder %s11, 1
      %p71 = scmp.ne.s32.totalorder %s66, %s68
      %p72 = scmp.eq.s32.totalorder %s11, 0
      %p73 = por %p71, %p72
      %p74 = scmp.ne.s32.totalorder %s66, %s68
      %p75 = scmp.eq.s32.totalorder %s16, 1
      %p76 = por %p74, %p75
      %p77 = scmp.ne.s32.totalorder %s68, %s69
      %p78 = scmp.eq.s32.totalorder %s16, 0
      %p79 = por %p77, %p78
      %p80 = scmp.ne.s32.totalorder %s68, %s69
      %p81 = scmp.eq.s32.totalorder %s17, 1
      %p82 = por %p80, %p81
      %p84 = scmp.ne.s32.totalorder %s69, %s83
      %p85 = scmp.eq.s32.totalorder %s17, 0
      %p86 = por %p84, %p85
      %s88 = sadd.s32 %s87, 1
      %p91 = scmp.eq.s32.totalorder %s11, 1
      %p92 = scmp.ne.s32.totalorder %s87, %s89
      %p93 = scmp.eq.s32.totalorder %s11, 0
      %p94 = por %p92, %p93
      %p95 = scmp.ne.s32.totalorder %s87, %s89
      %p96 = scmp.eq.s32.totalorder %s16, 1
      %p97 = por %p95, %p96
      %p98 = scmp.ne.s32.totalorder %s89, %s90
      %p99 = scmp.eq.s32.totalorder %s16, 0
      %p100 = por %p98, %p99
      %p101 = scmp.ne.s32.totalorder %s89, %s90
      %p102 = scmp.eq.s32.totalorder %s17, 1
      %p103 = por %p101, %p102
      %p105 = scmp.ne.s32.totalorder %s90, %s104
      %p106 = scmp.eq.s32.totalorder %s17, 0
      %p107 = por %p105, %p106
      %s109 = sadd.s32 %s108, 1
      %p112 = scmp.eq.s32.totalorder %s11, 1
      %p113 = scmp.ne.s32.totalorder %s108, %s110
      %p114 = scmp.eq.s32.totalorder %s11, 0
      %p115 = por %p113, %p114
      %p116 = scmp.ne.s32.totalorder %s108, %s110
      %p117 = scmp.eq.s32.totalorder %s16, 1
      %p118 = por %p116, %p117
      %p119 = scmp.ne.s32.totalorder %s110, %s111
      %p120 = scmp.eq.s32.totalorder %s16, 0
      %p121 = por %p119, %p120
      %p122 = scmp.ne.s32.totalorder %s110, %s111
      %p123 = scmp.eq.s32.totalorder %s17, 1
      %p124 = por %p122, %p123
      %p126 = scmp.ne.s32.totalorder %s111, %s125
      %p127 = scmp.eq.s32.totalorder %s17, 0
      %p128 = por %p126, %p127
      %s129 = ssub.s32 %s11, %s18
      %p130 = scmp.eq.s32.totalorder %s129, 0
      %s132 = sadd.s32 %s131, 1
      %s133 = scalar_select %p130, %s131, %s132
      %p136 = pneg %p130
      %p137 = scmp.eq.s32.totalorder %s11, 1
      %p138 = por %p136, %p137
      %p139 = scmp.ne.s32.totalorder %s131, %s134
      %p140 = scmp.eq.s32.totalorder %s11, 0
      %p141 = por %p139, %p140
      %p142 = scmp.ne.s32.totalorder %s131, %s134
      %p143 = scmp.eq.s32.totalorder %s16, 1
      %p144 = por %p142, %p143
      %p145 = scmp.ne.s32.totalorder %s134, %s135
      %p146 = scmp.eq.s32.totalorder %s16, 0
      %p147 = por %p145, %p146
      %p148 = scmp.ne.s32.totalorder %s134, %s135
      %p149 = scmp.eq.s32.totalorder %s17, 1
      %p150 = por %p148, %p149
      %p152 = scmp.ne.s32.totalorder %s135, %s151
      %p153 = scmp.eq.s32.totalorder %s17, 0
      %p154 = por %p152, %p153
      %p155 = scmp.le.s32.totalorder 1, %s11
      %p156 = scmp.lt.s32.totalorder %s11, 3
      %p157 = pnand %p155, %p156
      %p158 = pneg %p157
      // Predicated region
      $region9: #{domain_discriminator.1} parent=5 // pred_check
        _
      $region10: #{domain_discriminator.1} parent=5 // pred_check_branch
        %160 = sbr.rel (%p157) target = $region12
      $region11: #{domain_discriminator.1} parent=5 // pred_region
        %s161 = ssub.s32 %s11, 1
        // Predicated region
        $region13: #{domain_discriminator.1} parent=11 // pred_check
          %p162 = pneg %p58
        $region14: #{domain_discriminator.1} parent=11 // pred_check_branch
          %164 = sbr.rel (%p162) target = $region16
        $region15: #{domain_discriminator.1} parent=11 // pred_region
          _
        $region16: #{domain_discriminator.1} parent=11 // pred_fallthru
          _
        // Predicated region
        $region17: #{domain_discriminator.1} parent=11 // pred_check
          %p165 = pneg %p79
        $region18: #{domain_discriminator.1} parent=11 // pred_check_branch
          %167 = sbr.rel (%p165) target = $region20
        $region19: #{domain_discriminator.1} parent=11 // pred_region
          _
        $region20: #{domain_discriminator.1} parent=11 // pred_fallthru
          _
        // Predicated region
        $region21: #{domain_discriminator.1} parent=11 // pred_check
          %p168 = pneg %p100
        $region22: #{domain_discriminator.1} parent=11 // pred_check_branch
          %170 = sbr.rel (%p168) target = $region24
        $region23: #{domain_discriminator.1} parent=11 // pred_region
          _
        $region24: #{domain_discriminator.1} parent=11 // pred_fallthru
          _
        // Predicated region
        $region25: #{domain_discriminator.1} parent=11 // pred_check
          %p171 = pneg %p121
        $region26: #{domain_discriminator.1} parent=11 // pred_check_branch
          %173 = sbr.rel (%p171) target = $region28
        $region27: #{domain_discriminator.1} parent=11 // pred_region
          _
        $region28: #{domain_discriminator.1} parent=11 // pred_fallthru
          _
      $region12: #{domain_discriminator.1} parent=5 // pred_fallthru
        _
      %p174 = scmp.lt.s32.totalorder %s11, 2
      // Predicated region
      $region29: #{domain_discriminator.1} parent=5 // pred_check
        %p175 = pneg %p174
      $region30: #{domain_discriminator.1} parent=5 // pred_check_branch
        %177 = sbr.rel (%p175) target = $region32
      $region31: #{domain_discriminator.1} parent=5 // pred_region
        // Predicated region
        $region33: #{domain_discriminator.1} parent=31 // pred_check
          %p178 = pneg %p31
        $region34: #{domain_discriminator.1} parent=31 // pred_check_branch
          %180 = sbr.rel (%p178) target = $region36
        $region35: #{domain_discriminator.1} parent=31 // pred_region
          %s181 = smul.u32 129, %s11
          %s182 = ssub.s32 257, %s181
          %p183 = scmp.lt.s32.totalorder %s182, 129
          %s184 = scalar_select %p183, %s182, 129
          %s185 = smul.u32 128, %s184
          %p186 = scmp.lt.s32.totalorder %s181, 256
          %s187 = scalar_select %p186, %s181, 256
          %s188 = smul.addr %s187, 8
          %s189 = scalar_lea.vmem %s0, %s188
          %s190 = smul.u32 129, %s11
          %s191 = ssub.s32 257, %s190
          %p192 = scmp.lt.s32.totalorder %s191, 129
          %s193 = scalar_select %p192, %s191, 129
          %s194 = smul.u32 128, %s193
        $region36: #{domain_discriminator.1} parent=31 // pred_fallthru
          _
      $region32: #{domain_discriminator.1} parent=5 // pred_fallthru
        _
      %p195 = scmp.le.s32.totalorder 1, %s11
      %p196 = scmp.lt.s32.totalorder %s11, 3
      %p197 = pnand %p195, %p196
      %p198 = pneg %p197
      // Predicated region
      $region37: #{domain_discriminator.1} parent=5 // pred_check
        _
      $region38: #{domain_discriminator.1} parent=5 // pred_check_branch
        %200 = sbr.rel (%p197) target = $region40
      $region39: #{domain_discriminator.1} parent=5 // pred_region
        %s201 = ssub.s32 %s11, 1
        %s202 = smul.u32 129, %s16
        %s203 = ssub.s32 257, %s202
        %p204 = scmp.lt.s32.totalorder %s203, 129
        %s205 = scalar_select %p204, %s203, 129
        %s206 = smul.u32 128, %s205
        %p207 = scmp.lt.s32.totalorder %s202, 256
        %s208 = scalar_select %p207, %s202, 256
        %s209 = smul.addr %s208, 8
        %s210 = scalar_lea.vmem %s0, %s209
        %p211 = pneg %p37
        %p212 = pneg %p34
        %p213 = pneg %p58
        %p214 = pneg %p55
        %p215 = pneg %p79
        %p216 = pneg %p76
        %p217 = pneg %p100
        %p218 = pneg %p97
        %p219 = pneg %p121
        %p220 = pneg %p118
        %p221 = pneg %p147
        %p222 = pneg %p144
        %s223 = sand.u32 %s134, 1
        %s224 = sand.u32 %s134, 1
        %s225 = smul.addr %s224, 1032
        %s226 = scalar_lea.vmem [#allocation2], %s225
        %s227 = smul.u32 129, %s16
        %s228 = ssub.s32 257, %s227
        %p229 = scmp.lt.s32.totalorder %s228, 129
        %s230 = scalar_select %p229, %s228, 129
        %s231 = smul.u32 128, %s230
        %p232 = scmp.lt.s32.totalorder %s227, 256
        %s233 = scalar_select %p232, %s227, 256
        %s234 = smul.addr %s233, 8
        %s235 = scalar_lea.vmem %s0, %s234
        %s236 = smul.u32 129, %s16
        %s237 = ssub.s32 257, %s236
        %p238 = scmp.lt.s32.totalorder %s237, 129
        %s239 = scalar_select %p238, %s237, 129
        %s240 = smul.u32 128, %s239
        %s241 = smul.u32 129, %s16
        %s242 = ssub.s32 257, %s241
        %p243 = scmp.lt.s32.totalorder %s242, 129
        %s244 = scalar_select %p243, %s242, 129
        %s245 = smul.u32 128, %s244
        %v247 = vld [vmem:[%s235] sm:$0xff]
        %v248 = vld [vmem:[%s235 + $0x8] sm:$0xff]
        %v249 = vld [vmem:[%s235 + $0x10] sm:$0xff]
        %v250 = vld [vmem:[%s235 + $0x18] sm:$0xff]
        %v251 = vld [vmem:[%s235 + $0x20] sm:$0xff]
        %v252 = vld [vmem:[%s235 + $0x28] sm:$0xff]
        %v253 = vld [vmem:[%s235 + $0x30] sm:$0xff]
        %v254 = vld [vmem:[%s235 + $0x38] sm:$0xff]
        %v255 = vld [vmem:[%s235 + $0x40] sm:$0xff]
        %v256 = vld [vmem:[%s235 + $0x48] sm:$0xff]
        %v257 = vld [vmem:[%s235 + $0x50] sm:$0xff]
        %v258 = vld [vmem:[%s235 + $0x58] sm:$0xff]
        %v259 = vld [vmem:[%s235 + $0x60] sm:$0xff]
        %v260 = vld [vmem:[%s235 + $0x68] sm:$0xff]
        %v261 = vld [vmem:[%s235 + $0x70] sm:$0xff]
        %v262 = vld [vmem:[%s235 + $0x78] sm:$0xff]
        %v263 = vld [vmem:[%s235 + $0x80] sm:$0xff]
        %v264 = vld [vmem:[%s235 + $0x88] sm:$0xff]
        %v265 = vld [vmem:[%s235 + $0x90] sm:$0xff]
        %v266 = vld [vmem:[%s235 + $0x98] sm:$0xff]
        %v267 = vld [vmem:[%s235 + $0xa0] sm:$0xff]
        %v268 = vld [vmem:[%s235 + $0xa8] sm:$0xff]
        %v269 = vld [vmem:[%s235 + $0xb0] sm:$0xff]
        %v270 = vld [vmem:[%s235 + $0xb8] sm:$0xff]
        %v271 = vld [vmem:[%s235 + $0xc0] sm:$0xff]
        %v272 = vld [vmem:[%s235 + $0xc8] sm:$0xff]
        %v273 = vld [vmem:[%s235 + $0xd0] sm:$0xff]
        %v274 = vld [vmem:[%s235 + $0xd8] sm:$0xff]
        %v275 = vld [vmem:[%s235 + $0xe0] sm:$0xff]
        %v276 = vld [vmem:[%s235 + $0xe8] sm:$0xff]
        %v277 = vld [vmem:[%s235 + $0xf0] sm:$0xff]
        %v278 = vld [vmem:[%s235 + $0xf8] sm:$0xff]
        %v279 = vld [vmem:[%s235 + $0x100] sm:$0xff]
        %v280 = vld [vmem:[%s235 + $0x108] sm:$0xff]
        %v281 = vld [vmem:[%s235 + $0x110] sm:$0xff]
        %v282 = vld [vmem:[%s235 + $0x118] sm:$0xff]
        %v283 = vld [vmem:[%s235 + $0x120] sm:$0xff]
        %v284 = vld [vmem:[%s235 + $0x128] sm:$0xff]
        %v285 = vld [vmem:[%s235 + $0x130] sm:$0xff]
        %v286 = vld [vmem:[%s235 + $0x138] sm:$0xff]
        %v287 = vld [vmem:[%s235 + $0x140] sm:$0xff]
        %v288 = vld [vmem:[%s235 + $0x148] sm:$0xff]
        %v289 = vld [vmem:[%s235 + $0x150] sm:$0xff]
        %v290 = vld [vmem:[%s235 + $0x158] sm:$0xff]
        %v291 = vld [vmem:[%s235 + $0x160] sm:$0xff]
        %v292 = vld [vmem:[%s235 + $0x168] sm:$0xff]
        %v293 = vld [vmem:[%s235 + $0x170] sm:$0xff]
        %v294 = vld [vmem:[%s235 + $0x178] sm:$0xff]
        %v295 = vld [vmem:[%s235 + $0x180] sm:$0xff]
        %v296 = vld [vmem:[%s235 + $0x188] sm:$0xff]
        %v297 = vld [vmem:[%s235 + $0x190] sm:$0xff]
        %v298 = vld [vmem:[%s235 + $0x198] sm:$0xff]
        %v299 = vld [vmem:[%s235 + $0x1a0] sm:$0xff]
        %v300 = vld [vmem:[%s235 + $0x1a8] sm:$0xff]
        %v301 = vld [vmem:[%s235 + $0x1b0] sm:$0xff]
        %v302 = vld [vmem:[%s235 + $0x1b8] sm:$0xff]
        %v303 = vld [vmem:[%s235 + $0x1c0] sm:$0xff]
        %v304 = vld [vmem:[%s235 + $0x1c8] sm:$0xff]
        %v305 = vld [vmem:[%s235 + $0x1d0] sm:$0xff]
        %v306 = vld [vmem:[%s235 + $0x1d8] sm:$0xff]
        %v307 = vld [vmem:[%s235 + $0x1e0] sm:$0xff]
        %v308 = vld [vmem:[%s235 + $0x1e8] sm:$0xff]
        %v309 = vld [vmem:[%s235 + $0x1f0] sm:$0xff]
        %v310 = vld [vmem:[%s235 + $0x1f8] sm:$0xff]
        %v311 = vld [vmem:[%s235 + $0x200] sm:$0xff]
        %v312 = vld [vmem:[%s235 + $0x208] sm:$0xff]
        %v313 = vld [vmem:[%s235 + $0x210] sm:$0xff]
        %v314 = vld [vmem:[%s235 + $0x218] sm:$0xff]
        %v315 = vld [vmem:[%s235 + $0x220] sm:$0xff]
        %v316 = vld [vmem:[%s235 + $0x228] sm:$0xff]
        %v317 = vld [vmem:[%s235 + $0x230] sm:$0xff]
        %v318 = vld [vmem:[%s235 + $0x238] sm:$0xff]
        %v319 = vld [vmem:[%s235 + $0x240] sm:$0xff]
        %v320 = vld [vmem:[%s235 + $0x248] sm:$0xff]
        %v321 = vld [vmem:[%s235 + $0x250] sm:$0xff]
        %v322 = vld [vmem:[%s235 + $0x258] sm:$0xff]
        %v323 = vld [vmem:[%s235 + $0x260] sm:$0xff]
        %v324 = vld [vmem:[%s235 + $0x268] sm:$0xff]
        %v325 = vld [vmem:[%s235 + $0x270] sm:$0xff]
        %v326 = vld [vmem:[%s235 + $0x278] sm:$0xff]
        %v327 = vld [vmem:[%s235 + $0x280] sm:$0xff]
        %v328 = vld [vmem:[%s235 + $0x288] sm:$0xff]
        %v329 = vld [vmem:[%s235 + $0x290] sm:$0xff]
        %v330 = vld [vmem:[%s235 + $0x298] sm:$0xff]
        %v331 = vld [vmem:[%s235 + $0x2a0] sm:$0xff]
        %v332 = vld [vmem:[%s235 + $0x2a8] sm:$0xff]
        %v333 = vld [vmem:[%s235 + $0x2b0] sm:$0xff]
        %v334 = vld [vmem:[%s235 + $0x2b8] sm:$0xff]
        %v335 = vld [vmem:[%s235 + $0x2c0] sm:$0xff]
        %v336 = vld [vmem:[%s235 + $0x2c8] sm:$0xff]
        %v337 = vld [vmem:[%s235 + $0x2d0] sm:$0xff]
        %v338 = vld [vmem:[%s235 + $0x2d8] sm:$0xff]
        %v339 = vld [vmem:[%s235 + $0x2e0] sm:$0xff]
        %v340 = vld [vmem:[%s235 + $0x2e8] sm:$0xff]
        %v341 = vld [vmem:[%s235 + $0x2f0] sm:$0xff]
        %v342 = vld [vmem:[%s235 + $0x2f8] sm:$0xff]
        %v343 = vld [vmem:[%s235 + $0x300] sm:$0xff]
        %v344 = vld [vmem:[%s235 + $0x308] sm:$0xff]
        %v345 = vld [vmem:[%s235 + $0x310] sm:$0xff]
        %v346 = vld [vmem:[%s235 + $0x318] sm:$0xff]
        %v347 = vld [vmem:[%s235 + $0x320] sm:$0xff]
        %v348 = vld [vmem:[%s235 + $0x328] sm:$0xff]
        %v349 = vld [vmem:[%s235 + $0x330] sm:$0xff]
        %v350 = vld [vmem:[%s235 + $0x338] sm:$0xff]
        %v351 = vld [vmem:[%s235 + $0x340] sm:$0xff]
        %v352 = vld [vmem:[%s235 + $0x348] sm:$0xff]
        %v353 = vld [vmem:[%s235 + $0x350] sm:$0xff]
        %v354 = vld [vmem:[%s235 + $0x358] sm:$0xff]
        %v355 = vld [vmem:[%s235 + $0x360] sm:$0xff]
        %v356 = vld [vmem:[%s235 + $0x368] sm:$0xff]
        %v357 = vld [vmem:[%s235 + $0x370] sm:$0xff]
        %v358 = vld [vmem:[%s235 + $0x378] sm:$0xff]
        %v359 = vld [vmem:[%s235 + $0x380] sm:$0xff]
        %v360 = vld [vmem:[%s235 + $0x388] sm:$0xff]
        %v361 = vld [vmem:[%s235 + $0x390] sm:$0xff]
        %v362 = vld [vmem:[%s235 + $0x398] sm:$0xff]
        %v363 = vld [vmem:[%s235 + $0x3a0] sm:$0xff]
        %v364 = vld [vmem:[%s235 + $0x3a8] sm:$0xff]
        %v365 = vld [vmem:[%s235 + $0x3b0] sm:$0xff]
        %v366 = vld [vmem:[%s235 + $0x3b8] sm:$0xff]
        %v367 = vld [vmem:[%s235 + $0x3c0] sm:$0xff]
        %v368 = vld [vmem:[%s235 + $0x3c8] sm:$0xff]
        %v369 = vld [vmem:[%s235 + $0x3d0] sm:$0xff]
        %v370 = vld [vmem:[%s235 + $0x3d8] sm:$0xff]
        %v371 = vld [vmem:[%s235 + $0x3e0] sm:$0xff]
        %v372 = vld [vmem:[%s235 + $0x3e8] sm:$0xff]
        %v373 = vld [vmem:[%s235 + $0x3f0] sm:$0xff]
        %v374 = vld [vmem:[%s235 + $0x3f8] sm:$0xff]
        %v375 = vld [vmem:[%s235 + $0x400] sm:$0xff]
        %v376 = vpack.c.bf16 %v248, %v247
        %v377 = vpack.c.bf16 %v250, %v249
        %v378 = vpack.c.bf16 %v252, %v251
        %v379 = vpack.c.bf16 %v254, %v253
        %v380 = vpack.c.bf16 %v256, %v255
        %v381 = vpack.c.bf16 %v258, %v257
        %v382 = vpack.c.bf16 %v260, %v259
        %v383 = vpack.c.bf16 %v262, %v261
        %v384 = vpack.c.bf16 %v264, %v263
        %v385 = vpack.c.bf16 %v266, %v265
        %v386 = vpack.c.bf16 %v268, %v267
        %v387 = vpack.c.bf16 %v270, %v269
        %v388 = vpack.c.bf16 %v272, %v271
        %v389 = vpack.c.bf16 %v274, %v273
        %v390 = vpack.c.bf16 %v276, %v275
        %v391 = vpack.c.bf16 %v278, %v277
        %v392 = vpack.c.bf16 %v280, %v279
        %v393 = vpack.c.bf16 %v282, %v281
        %v394 = vpack.c.bf16 %v284, %v283
        %v395 = vpack.c.bf16 %v286, %v285
        %v396 = vpack.c.bf16 %v288, %v287
        %v397 = vpack.c.bf16 %v290, %v289
        %v398 = vpack.c.bf16 %v292, %v291
        %v399 = vpack.c.bf16 %v294, %v293
        %v400 = vpack.c.bf16 %v296, %v295
        %v401 = vpack.c.bf16 %v298, %v297
        %v402 = vpack.c.bf16 %v300, %v299
        %v403 = vpack.c.bf16 %v302, %v301
        %v404 = vpack.c.bf16 %v304, %v303
        %v405 = vpack.c.bf16 %v306, %v305
        %v406 = vpack.c.bf16 %v308, %v307
        %v407 = vpack.c.bf16 %v310, %v309
        %v408 = vpack.c.bf16 %v312, %v311
        %v409 = vpack.c.bf16 %v314, %v313
        %v410 = vpack.c.bf16 %v316, %v315
        %v411 = vpack.c.bf16 %v318, %v317
        %v412 = vpack.c.bf16 %v320, %v319
        %v413 = vpack.c.bf16 %v322, %v321
        %v414 = vpack.c.bf16 %v324, %v323
        %v415 = vpack.c.bf16 %v326, %v325
        %v416 = vpack.c.bf16 %v328, %v327
        %v417 = vpack.c.bf16 %v330, %v329
        %v418 = vpack.c.bf16 %v332, %v331
        %v419 = vpack.c.bf16 %v334, %v333
        %v420 = vpack.c.bf16 %v336, %v335
        %v421 = vpack.c.bf16 %v338, %v337
        %v422 = vpack.c.bf16 %v340, %v339
        %v423 = vpack.c.bf16 %v342, %v341
        %v424 = vpack.c.bf16 %v344, %v343
        %v425 = vpack.c.bf16 %v346, %v345
        %v426 = vpack.c.bf16 %v348, %v347
        %v427 = vpack.c.bf16 %v350, %v349
        %v428 = vpack.c.bf16 %v352, %v351
        %v429 = vpack.c.bf16 %v354, %v353
        %v430 = vpack.c.bf16 %v356, %v355
        %v431 = vpack.c.bf16 %v358, %v357
        %v432 = vpack.c.bf16 %v360, %v359
        %v433 = vpack.c.bf16 %v362, %v361
        %v434 = vpack.c.bf16 %v364, %v363
        %v435 = vpack.c.bf16 %v366, %v365
        %v436 = vpack.c.bf16 %v368, %v367
        %v437 = vpack.c.bf16 %v370, %v369
        %v438 = vpack.c.bf16 %v372, %v371
        %v439 = vpack.c.bf16 %v374, %v373
        %v440 = vpack.c.bf16 %v375, %v375
        %v441 = vld [vmem:[%s1] sm:$0xf]
        %v442 = vld [vmem:[%s1 + $0x4] sm:$0xf]
        %v443 = vld [vmem:[%s1 + $0x8] sm:$0xf]
        %v444 = vld [vmem:[%s1 + $0xc] sm:$0xf]
        %v445 = vld [vmem:[%s2] sm:$0x1]
        %v447 = vlaneseq
        %v448 = vshrl.u32 %v447, 7
        %v449 = vsub.s32 0, %v448
        %v450 = vrot.slane %v445, %v449
        %v456 = vunpack.c.l.b16 %v441
        %v457 = vunpack.c.l.b16 %v442
        %v458 = vunpack.c.l.b16 %v443
        %v459 = vunpack.c.l.b16 %v444
        %v460 = vpack.c.b16 %v457, %v456
        %v461 = vpack.c.b16 %v459, %v458
        %vm464 = vcmask 261120
        %v466 = vsel %vm464, %v376, 0
        %v469 = vsel %vm464, %v377, 0
        %v472 = vsel %vm464, %v378, 0
        %v475 = vsel %vm464, %v379, 0
        %v478 = vsel %vm464, %v380, 0
        %v481 = vsel %vm464, %v381, 0
        %v484 = vsel %vm464, %v382, 0
        %v487 = vsel %vm464, %v383, 0
        %v490 = vsel %vm464, %v384, 0
        %v493 = vsel %vm464, %v385, 0
        %v496 = vsel %vm464, %v386, 0
        %v499 = vsel %vm464, %v387, 0
        %v502 = vsel %vm464, %v388, 0
        %v505 = vsel %vm464, %v389, 0
        %v508 = vsel %vm464, %v390, 0
        %v511 = vsel %vm464, %v391, 0
        %v514 = vsel %vm464, %v392, 0
        %v517 = vsel %vm464, %v393, 0
        %v520 = vsel %vm464, %v394, 0
        %v523 = vsel %vm464, %v395, 0
        %v526 = vsel %vm464, %v396, 0
        %v529 = vsel %vm464, %v397, 0
        %v532 = vsel %vm464, %v398, 0
        %v535 = vsel %vm464, %v399, 0
        %v538 = vsel %vm464, %v400, 0
        %v541 = vsel %vm464, %v401, 0
        %v544 = vsel %vm464, %v402, 0
        %v547 = vsel %vm464, %v403, 0
        %v550 = vsel %vm464, %v404, 0
        %v553 = vsel %vm464, %v405, 0
        %v556 = vsel %vm464, %v406, 0
        %v559 = vsel %vm464, %v407, 0
        %v562 = vsel %vm464, %v408, 0
        %v565 = vsel %vm464, %v409, 0
        %v568 = vsel %vm464, %v410, 0
        %v571 = vsel %vm464, %v411, 0
        %v574 = vsel %vm464, %v412, 0
        %v577 = vsel %vm464, %v413, 0
        %v580 = vsel %vm464, %v414, 0
        %v583 = vsel %vm464, %v415, 0
        %v586 = vsel %vm464, %v416, 0
        %v589 = vsel %vm464, %v417, 0
        %v592 = vsel %vm464, %v418, 0
        %v595 = vsel %vm464, %v419, 0
        %v598 = vsel %vm464, %v420, 0
        %v601 = vsel %vm464, %v421, 0
        %v604 = vsel %vm464, %v422, 0
        %v607 = vsel %vm464, %v423, 0
        %v610 = vsel %vm464, %v424, 0
        %v613 = vsel %vm464, %v425, 0
        %v616 = vsel %vm464, %v426, 0
        %v619 = vsel %vm464, %v427, 0
        %v622 = vsel %vm464, %v428, 0
        %v625 = vsel %vm464, %v429, 0
        %v628 = vsel %vm464, %v430, 0
        %v631 = vsel %vm464, %v431, 0
        %v634 = vsel %vm464, %v432, 0
        %v637 = vsel %vm464, %v433, 0
        %v640 = vsel %vm464, %v434, 0
        %v643 = vsel %vm464, %v435, 0
        %v646 = vsel %vm464, %v436, 0
        %v649 = vsel %vm464, %v437, 0
        %v652 = vsel %vm464, %v438, 0
        %v655 = vsel %vm464, %v439, 0
        %v658 = vsel %vm464, %v440, 0
        %660 = vmatprep.subr.bf16.mxu0 0
        %661 = vmatpush1.bf16.msra.mxu0 0
        %662 = vmatprep.subr.bf16.mxu0 0
        %663 = vmatpush1.bf16.msra.mxu0 0
        %664 = vmatprep.subr.bf16.mxu0 0
        %665 = vmatpush1.bf16.msra.mxu0 0
        %666 = vmatprep.subr.bf16.mxu0 0
        %667 = vmatpush1.bf16.msra.mxu0 0
        %668 = vmatprep.subr.bf16.mxu0 0
        %669 = vmatpush1.bf16.msra.mxu0 0
        %670 = vmatprep.subr.bf16.mxu0 0
        %671 = vmatpush1.bf16.msra.mxu0 0
        %672 = vmatprep.subr.bf16.mxu0 0
        %673 = vmatpush1.bf16.msra.mxu0 %v461
        %674 = vmatprep.subr.bf16.mxu0 0
        %675 = vmatpush1.bf16.msra.mxu0 %v460
        %676 = vmatprep.subr.bf16.mxu0 0
        %677 = vmatpush2.bf16.msra.mxu0 0
        %678 = vmatprep.subr.bf16.mxu0 0
        %679 = vmatpush2.bf16.msra.mxu0 0
        %680 = vmatprep.subr.bf16.mxu0 0
        %681 = vmatpush2.bf16.msra.mxu0 0
        %682 = vmatprep.subr.bf16.mxu0 0
        %683 = vmatpush2.bf16.msra.mxu0 0
        %684 = vmatprep.subr.bf16.mxu0 0
        %685 = vmatpush2.bf16.msra.mxu0 0
        %686 = vmatprep.subr.bf16.mxu0 0
        %687 = vmatpush2.bf16.msra.mxu0 0
        %688 = vmatprep.subr.bf16.mxu0 0
        %689 = vmatpush2.bf16.msra.mxu0 0
        %690 = vmatprep.subr.bf16.mxu0 0
        %691 = vmatpush2.bf16.msra.mxu0 0
        %692 = vmatprep.mubr.bf16.mxu0 0
        %693 = vmatmul.mubr.bf16.gmra.mxu0 %v466
        %v694 = vpop.f32.mrf.mxu0
        %v695 = vadd.f32 %v450, %v694
        %v696 = vpop.f32.mrf.mxu0
        %v697 = vpop.f32.mrf.mxu0
        %v698 = vadd.f32 %v450, %v697
        %v699 = vpop.f32.mrf.mxu0
        %700 = vmatprep.mubr.bf16.mxu0 0
        %701 = vmatmul.mubr.bf16.gmra.mxu0 %v469
        %v702 = vpop.f32.mrf.mxu0
        %v703 = vadd.f32 %v450, %v702
        %v704 = vpop.f32.mrf.mxu0
        %v705 = vpop.f32.mrf.mxu0
        %v706 = vadd.f32 %v450, %v705
        %v707 = vpop.f32.mrf.mxu0
        %708 = vmatprep.mubr.bf16.mxu0 0
        %709 = vmatmul.mubr.bf16.gmra.mxu0 %v472
        %v710 = vpop.f32.mrf.mxu0
        %v711 = vadd.f32 %v450, %v710
        %v712 = vpop.f32.mrf.mxu0
        %v713 = vpop.f32.mrf.mxu0
        %v714 = vadd.f32 %v450, %v713
        %v715 = vpop.f32.mrf.mxu0
        %716 = vmatprep.mubr.bf16.mxu0 0
        %717 = vmatmul.mubr.bf16.gmra.mxu0 %v475
        %v718 = vpop.f32.mrf.mxu0
        %v719 = vadd.f32 %v450, %v718
        %v720 = vpop.f32.mrf.mxu0
        %v721 = vpop.f32.mrf.mxu0
        %v722 = vadd.f32 %v450, %v721
        %v723 = vpop.f32.mrf.mxu0
        %724 = vmatprep.mubr.bf16.mxu0 0
        %725 = vmatmul.mubr.bf16.gmra.mxu0 %v478
        %v726 = vpop.f32.mrf.mxu0
        %v727 = vadd.f32 %v450, %v726
        %v728 = vpop.f32.mrf.mxu0
        %v729 = vpop.f32.mrf.mxu0
        %v730 = vadd.f32 %v450, %v729
        %v731 = vpop.f32.mrf.mxu0
        %732 = vmatprep.mubr.bf16.mxu0 0
        %733 = vmatmul.mubr.bf16.gmra.mxu0 %v481
        %v734 = vpop.f32.mrf.mxu0
        %v735 = vadd.f32 %v450, %v734
        %v736 = vpop.f32.mrf.mxu0
        %v737 = vpop.f32.mrf.mxu0
        %v738 = vadd.f32 %v450, %v737
        %v739 = vpop.f32.mrf.mxu0
        %740 = vmatprep.mubr.bf16.mxu0 0
        %741 = vmatmul.mubr.bf16.gmra.mxu0 %v484
        %v742 = vpop.f32.mrf.mxu0
        %v743 = vadd.f32 %v450, %v742
        %v744 = vpop.f32.mrf.mxu0
        %v745 = vpop.f32.mrf.mxu0
        %v746 = vadd.f32 %v450, %v745
        %v747 = vpop.f32.mrf.mxu0
        %748 = vmatprep.mubr.bf16.mxu0 0
        %749 = vmatmul.mubr.bf16.gmra.mxu0 %v487
        %v750 = vpop.f32.mrf.mxu0
        %v751 = vadd.f32 %v450, %v750
        %v752 = vpop.f32.mrf.mxu0
        %v753 = vpop.f32.mrf.mxu0
        %v754 = vadd.f32 %v450, %v753
        %v755 = vpop.f32.mrf.mxu0
        %756 = vmatprep.mubr.bf16.mxu0 0
        %757 = vmatmul.mubr.bf16.gmra.mxu0 %v490
        %v758 = vpop.f32.mrf.mxu0
        %v759 = vadd.f32 %v450, %v758
        %v760 = vpop.f32.mrf.mxu0
        %v761 = vpop.f32.mrf.mxu0
        %v762 = vadd.f32 %v450, %v761
        %v763 = vpop.f32.mrf.mxu0
        %764 = vmatprep.mubr.bf16.mxu0 0
        %765 = vmatmul.mubr.bf16.gmra.mxu0 %v493
        %v766 = vpop.f32.mrf.mxu0
        %v767 = vadd.f32 %v450, %v766
        %v768 = vpop.f32.mrf.mxu0
        %v769 = vpop.f32.mrf.mxu0
        %v770 = vadd.f32 %v450, %v769
        %v771 = vpop.f32.mrf.mxu0
        %772 = vmatprep.mubr.bf16.mxu0 0
        %773 = vmatmul.mubr.bf16.gmra.mxu0 %v496
        %v774 = vpop.f32.mrf.mxu0
        %v775 = vadd.f32 %v450, %v774
        %v776 = vpop.f32.mrf.mxu0
        %v777 = vpop.f32.mrf.mxu0
        %v778 = vadd.f32 %v450, %v777
        %v779 = vpop.f32.mrf.mxu0
        %780 = vmatprep.mubr.bf16.mxu0 0
        %781 = vmatmul.mubr.bf16.gmra.mxu0 %v499
        %v782 = vpop.f32.mrf.mxu0
        %v783 = vadd.f32 %v450, %v782
        %v784 = vpop.f32.mrf.mxu0
        %v785 = vpop.f32.mrf.mxu0
        %v786 = vadd.f32 %v450, %v785
        %v787 = vpop.f32.mrf.mxu0
        %788 = vmatprep.mubr.bf16.mxu0 0
        %789 = vmatmul.mubr.bf16.gmra.mxu0 %v502
        %v790 = vpop.f32.mrf.mxu0
        %v791 = vadd.f32 %v450, %v790
        %v792 = vpop.f32.mrf.mxu0
        %v793 = vpop.f32.mrf.mxu0
        %v794 = vadd.f32 %v450, %v793
        %v795 = vpop.f32.mrf.mxu0
        %796 = vmatprep.mubr.bf16.mxu0 0
        %797 = vmatmul.mubr.bf16.gmra.mxu0 %v505
        %v798 = vpop.f32.mrf.mxu0
        %v799 = vadd.f32 %v450, %v798
        %v800 = vpop.f32.mrf.mxu0
        %v801 = vpop.f32.mrf.mxu0
        %v802 = vadd.f32 %v450, %v801
        %v803 = vpop.f32.mrf.mxu0
        %804 = vmatprep.mubr.bf16.mxu0 0
        %805 = vmatmul.mubr.bf16.gmra.mxu0 %v508
        %v806 = vpop.f32.mrf.mxu0
        %v807 = vadd.f32 %v450, %v806
        %v808 = vpop.f32.mrf.mxu0
        %v809 = vpop.f32.mrf.mxu0
        %v810 = vadd.f32 %v450, %v809
        %v811 = vpop.f32.mrf.mxu0
        %812 = vmatprep.mubr.bf16.mxu0 0
        %813 = vmatmul.mubr.bf16.gmra.mxu0 %v511
        %v814 = vpop.f32.mrf.mxu0
        %v815 = vadd.f32 %v450, %v814
        %v816 = vpop.f32.mrf.mxu0
        %v817 = vpop.f32.mrf.mxu0
        %v818 = vadd.f32 %v450, %v817
        %v819 = vpop.f32.mrf.mxu0
        %820 = vmatprep.mubr.bf16.mxu0 0
        %821 = vmatmul.mubr.bf16.gmra.mxu0 %v514
        %v822 = vpop.f32.mrf.mxu0
        %v823 = vadd.f32 %v450, %v822
        %v824 = vpop.f32.mrf.mxu0
        %v825 = vpop.f32.mrf.mxu0
        %v826 = vadd.f32 %v450, %v825
        %v827 = vpop.f32.mrf.mxu0
        %828 = vmatprep.mubr.bf16.mxu0 0
        %829 = vmatmul.mubr.bf16.gmra.mxu0 %v517
        %v830 = vpop.f32.mrf.mxu0
        %v831 = vadd.f32 %v450, %v830
        %v832 = vpop.f32.mrf.mxu0
        %v833 = vpop.f32.mrf.mxu0
        %v834 = vadd.f32 %v450, %v833
        %v835 = vpop.f32.mrf.mxu0
        %836 = vmatprep.mubr.bf16.mxu0 0
        %837 = vmatmul.mubr.bf16.gmra.mxu0 %v520
        %v838 = vpop.f32.mrf.mxu0
        %v839 = vadd.f32 %v450, %v838
        %v840 = vpop.f32.mrf.mxu0
        %v841 = vpop.f32.mrf.mxu0
        %v842 = vadd.f32 %v450, %v841
        %v843 = vpop.f32.mrf.mxu0
        %844 = vmatprep.mubr.bf16.mxu0 0
        %845 = vmatmul.mubr.bf16.gmra.mxu0 %v523
        %v846 = vpop.f32.mrf.mxu0
        %v847 = vadd.f32 %v450, %v846
        %v848 = vpop.f32.mrf.mxu0
        %v849 = vpop.f32.mrf.mxu0
        %v850 = vadd.f32 %v450, %v849
        %v851 = vpop.f32.mrf.mxu0
        %852 = vmatprep.mubr.bf16.mxu0 0
        %853 = vmatmul.mubr.bf16.gmra.mxu0 %v526
        %v854 = vpop.f32.mrf.mxu0
        %v855 = vadd.f32 %v450, %v854
        %v856 = vpop.f32.mrf.mxu0
        %v857 = vpop.f32.mrf.mxu0
        %v858 = vadd.f32 %v450, %v857
        %v859 = vpop.f32.mrf.mxu0
        %860 = vmatprep.mubr.bf16.mxu0 0
        %861 = vmatmul.mubr.bf16.gmra.mxu0 %v529
        %v862 = vpop.f32.mrf.mxu0
        %v863 = vadd.f32 %v450, %v862
        %v864 = vpop.f32.mrf.mxu0
        %v865 = vpop.f32.mrf.mxu0
        %v866 = vadd.f32 %v450, %v865
        %v867 = vpop.f32.mrf.mxu0
        %868 = vmatprep.mubr.bf16.mxu0 0
        %869 = vmatmul.mubr.bf16.gmra.mxu0 %v532
        %v870 = vpop.f32.mrf.mxu0
        %v871 = vadd.f32 %v450, %v870
        %v872 = vpop.f32.mrf.mxu0
        %v873 = vpop.f32.mrf.mxu0
        %v874 = vadd.f32 %v450, %v873
        %v875 = vpop.f32.mrf.mxu0
        %876 = vmatprep.mubr.bf16.mxu0 0
        %877 = vmatmul.mubr.bf16.gmra.mxu0 %v535
        %v878 = vpop.f32.mrf.mxu0
        %v879 = vadd.f32 %v450, %v878
        %v880 = vpop.f32.mrf.mxu0
        %v881 = vpop.f32.mrf.mxu0
        %v882 = vadd.f32 %v450, %v881
        %v883 = vpop.f32.mrf.mxu0
        %884 = vmatprep.mubr.bf16.mxu0 0
        %885 = vmatmul.mubr.bf16.gmra.mxu0 %v538
        %v886 = vpop.f32.mrf.mxu0
        %v887 = vadd.f32 %v450, %v886
        %v888 = vpop.f32.mrf.mxu0
        %v889 = vpop.f32.mrf.mxu0
        %v890 = vadd.f32 %v450, %v889
        %v891 = vpop.f32.mrf.mxu0
        %892 = vmatprep.mubr.bf16.mxu0 0
        %893 = vmatmul.mubr.bf16.gmra.mxu0 %v541
        %v894 = vpop.f32.mrf.mxu0
        %v895 = vadd.f32 %v450, %v894
        %v896 = vpop.f32.mrf.mxu0
        %v897 = vpop.f32.mrf.mxu0
        %v898 = vadd.f32 %v450, %v897
        %v899 = vpop.f32.mrf.mxu0
        %900 = vmatprep.mubr.bf16.mxu0 0
        %901 = vmatmul.mubr.bf16.gmra.mxu0 %v544
        %v902 = vpop.f32.mrf.mxu0
        %v903 = vadd.f32 %v450, %v902
        %v904 = vpop.f32.mrf.mxu0
        %v905 = vpop.f32.mrf.mxu0
        %v906 = vadd.f32 %v450, %v905
        %v907 = vpop.f32.mrf.mxu0
        %908 = vmatprep.mubr.bf16.mxu0 0
        %909 = vmatmul.mubr.bf16.gmra.mxu0 %v547
        %v910 = vpop.f32.mrf.mxu0
        %v911 = vadd.f32 %v450, %v910
        %v912 = vpop.f32.mrf.mxu0
        %v913 = vpop.f32.mrf.mxu0
        %v914 = vadd.f32 %v450, %v913
        %v915 = vpop.f32.mrf.mxu0
        %916 = vmatprep.mubr.bf16.mxu0 0
        %917 = vmatmul.mubr.bf16.gmra.mxu0 %v550
        %v918 = vpop.f32.mrf.mxu0
        %v919 = vadd.f32 %v450, %v918
        %v920 = vpop.f32.mrf.mxu0
        %v921 = vpop.f32.mrf.mxu0
        %v922 = vadd.f32 %v450, %v921
        %v923 = vpop.f32.mrf.mxu0
        %924 = vmatprep.mubr.bf16.mxu0 0
        %925 = vmatmul.mubr.bf16.gmra.mxu0 %v553
        %v926 = vpop.f32.mrf.mxu0
        %v927 = vadd.f32 %v450, %v926
        %v928 = vpop.f32.mrf.mxu0
        %v929 = vpop.f32.mrf.mxu0
        %v930 = vadd.f32 %v450, %v929
        %v931 = vpop.f32.mrf.mxu0
        %932 = vmatprep.mubr.bf16.mxu0 0
        %933 = vmatmul.mubr.bf16.gmra.mxu0 %v556
        %v934 = vpop.f32.mrf.mxu0
        %v935 = vadd.f32 %v450, %v934
        %v936 = vpop.f32.mrf.mxu0
        %v937 = vpop.f32.mrf.mxu0
        %v938 = vadd.f32 %v450, %v937
        %v939 = vpop.f32.mrf.mxu0
        %940 = vmatprep.mubr.bf16.mxu0 0
        %941 = vmatmul.mubr.bf16.gmra.mxu0 %v559
        %v942 = vpop.f32.mrf.mxu0
        %v943 = vadd.f32 %v450, %v942
        %v944 = vpop.f32.mrf.mxu0
        %v945 = vpop.f32.mrf.mxu0
        %v946 = vadd.f32 %v450, %v945
        %v947 = vpop.f32.mrf.mxu0
        %948 = vmatprep.mubr.bf16.mxu0 0
        %949 = vmatmul.mubr.bf16.gmra.mxu0 %v562
        %v950 = vpop.f32.mrf.mxu0
        %v951 = vadd.f32 %v450, %v950
        %v952 = vpop.f32.mrf.mxu0
        %v953 = vpop.f32.mrf.mxu0
        %v954 = vadd.f32 %v450, %v953
        %v955 = vpop.f32.mrf.mxu0
        %956 = vmatprep.mubr.bf16.mxu0 0
        %957 = vmatmul.mubr.bf16.gmra.mxu0 %v565
        %v958 = vpop.f32.mrf.mxu0
        %v959 = vadd.f32 %v450, %v958
        %v960 = vpop.f32.mrf.mxu0
        %v961 = vpop.f32.mrf.mxu0
        %v962 = vadd.f32 %v450, %v961
        %v963 = vpop.f32.mrf.mxu0
        %964 = vmatprep.mubr.bf16.mxu0 0
        %965 = vmatmul.mubr.bf16.gmra.mxu0 %v568
        %v966 = vpop.f32.mrf.mxu0
        %v967 = vadd.f32 %v450, %v966
        %v968 = vpop.f32.mrf.mxu0
        %v969 = vpop.f32.mrf.mxu0
        %v970 = vadd.f32 %v450, %v969
        %v971 = vpop.f32.mrf.mxu0
        %972 = vmatprep.mubr.bf16.mxu0 0
        %973 = vmatmul.mubr.bf16.gmra.mxu0 %v571
        %v974 = vpop.f32.mrf.mxu0
        %v975 = vadd.f32 %v450, %v974
        %v976 = vpop.f32.mrf.mxu0
        %v977 = vpop.f32.mrf.mxu0
        %v978 = vadd.f32 %v450, %v977
        %v979 = vpop.f32.mrf.mxu0
        %980 = vmatprep.mubr.bf16.mxu0 0
        %981 = vmatmul.mubr.bf16.gmra.mxu0 %v574
        %v982 = vpop.f32.mrf.mxu0
        %v983 = vadd.f32 %v450, %v982
        %v984 = vpop.f32.mrf.mxu0
        %v985 = vpop.f32.mrf.mxu0
        %v986 = vadd.f32 %v450, %v985
        %v987 = vpop.f32.mrf.mxu0
        %988 = vmatprep.mubr.bf16.mxu0 0
        %989 = vmatmul.mubr.bf16.gmra.mxu0 %v577
        %v990 = vpop.f32.mrf.mxu0
        %v991 = vadd.f32 %v450, %v990
        %v992 = vpop.f32.mrf.mxu0
        %v993 = vpop.f32.mrf.mxu0
        %v994 = vadd.f32 %v450, %v993
        %v995 = vpop.f32.mrf.mxu0
        %996 = vmatprep.mubr.bf16.mxu0 0
        %997 = vmatmul.mubr.bf16.gmra.mxu0 %v580
        %v998 = vpop.f32.mrf.mxu0
        %v999 = vadd.f32 %v450, %v998
        %v1000 = vpop.f32.mrf.mxu0
        %v1001 = vpop.f32.mrf.mxu0
        %v1002 = vadd.f32 %v450, %v1001
        %v1003 = vpop.f32.mrf.mxu0
        %1004 = vmatprep.mubr.bf16.mxu0 0
        %1005 = vmatmul.mubr.bf16.gmra.mxu0 %v583
        %v1006 = vpop.f32.mrf.mxu0
        %v1007 = vadd.f32 %v450, %v1006
        %v1008 = vpop.f32.mrf.mxu0
        %v1009 = vpop.f32.mrf.mxu0
        %v1010 = vadd.f32 %v450, %v1009
        %v1011 = vpop.f32.mrf.mxu0
        %1012 = vmatprep.mubr.bf16.mxu0 0
        %1013 = vmatmul.mubr.bf16.gmra.mxu0 %v586
        %v1014 = vpop.f32.mrf.mxu0
        %v1015 = vadd.f32 %v450, %v1014
        %v1016 = vpop.f32.mrf.mxu0
        %v1017 = vpop.f32.mrf.mxu0
        %v1018 = vadd.f32 %v450, %v1017
        %v1019 = vpop.f32.mrf.mxu0
        %1020 = vmatprep.mubr.bf16.mxu0 0
        %1021 = vmatmul.mubr.bf16.gmra.mxu0 %v589
        %v1022 = vpop.f32.mrf.mxu0
        %v1023 = vadd.f32 %v450, %v1022
        %v1024 = vpop.f32.mrf.mxu0
        %v1025 = vpop.f32.mrf.mxu0
        %v1026 = vadd.f32 %v450, %v1025
        %v1027 = vpop.f32.mrf.mxu0
        %1028 = vmatprep.mubr.bf16.mxu0 0
        %1029 = vmatmul.mubr.bf16.gmra.mxu0 %v592
        %v1030 = vpop.f32.mrf.mxu0
        %v1031 = vadd.f32 %v450, %v1030
        %v1032 = vpop.f32.mrf.mxu0
        %v1033 = vpop.f32.mrf.mxu0
        %v1034 = vadd.f32 %v450, %v1033
        %v1035 = vpop.f32.mrf.mxu0
        %1036 = vmatprep.mubr.bf16.mxu0 0
        %1037 = vmatmul.mubr.bf16.gmra.mxu0 %v595
        %v1038 = vpop.f32.mrf.mxu0
        %v1039 = vadd.f32 %v450, %v1038
        %v1040 = vpop.f32.mrf.mxu0
        %v1041 = vpop.f32.mrf.mxu0
        %v1042 = vadd.f32 %v450, %v1041
        %v1043 = vpop.f32.mrf.mxu0
        %1044 = vmatprep.mubr.bf16.mxu0 0
        %1045 = vmatmul.mubr.bf16.gmra.mxu0 %v598
        %v1046 = vpop.f32.mrf.mxu0
        %v1047 = vadd.f32 %v450, %v1046
        %v1048 = vpop.f32.mrf.mxu0
        %v1049 = vpop.f32.mrf.mxu0
        %v1050 = vadd.f32 %v450, %v1049
        %v1051 = vpop.f32.mrf.mxu0
        %1052 = vmatprep.mubr.bf16.mxu0 0
        %1053 = vmatmul.mubr.bf16.gmra.mxu0 %v601
        %v1054 = vpop.f32.mrf.mxu0
        %v1055 = vadd.f32 %v450, %v1054
        %v1056 = vpop.f32.mrf.mxu0
        %v1057 = vpop.f32.mrf.mxu0
        %v1058 = vadd.f32 %v450, %v1057
        %v1059 = vpop.f32.mrf.mxu0
        %1060 = vmatprep.mubr.bf16.mxu0 0
        %1061 = vmatmul.mubr.bf16.gmra.mxu0 %v604
        %v1062 = vpop.f32.mrf.mxu0
        %v1063 = vadd.f32 %v450, %v1062
        %v1064 = vpop.f32.mrf.mxu0
        %v1065 = vpop.f32.mrf.mxu0
        %v1066 = vadd.f32 %v450, %v1065
        %v1067 = vpop.f32.mrf.mxu0
        %1068 = vmatprep.mubr.bf16.mxu0 0
        %1069 = vmatmul.mubr.bf16.gmra.mxu0 %v607
        %v1070 = vpop.f32.mrf.mxu0
        %v1071 = vadd.f32 %v450, %v1070
        %v1072 = vpop.f32.mrf.mxu0
        %v1073 = vpop.f32.mrf.mxu0
        %v1074 = vadd.f32 %v450, %v1073
        %v1075 = vpop.f32.mrf.mxu0
        %1076 = vmatprep.mubr.bf16.mxu0 0
        %1077 = vmatmul.mubr.bf16.gmra.mxu0 %v610
        %v1078 = vpop.f32.mrf.mxu0
        %v1079 = vadd.f32 %v450, %v1078
        %v1080 = vpop.f32.mrf.mxu0
        %v1081 = vpop.f32.mrf.mxu0
        %v1082 = vadd.f32 %v450, %v1081
        %v1083 = vpop.f32.mrf.mxu0
        %1084 = vmatprep.mubr.bf16.mxu0 0
        %1085 = vmatmul.mubr.bf16.gmra.mxu0 %v613
        %v1086 = vpop.f32.mrf.mxu0
        %v1087 = vadd.f32 %v450, %v1086
        %v1088 = vpop.f32.mrf.mxu0
        %v1089 = vpop.f32.mrf.mxu0
        %v1090 = vadd.f32 %v450, %v1089
        %v1091 = vpop.f32.mrf.mxu0
        %1092 = vmatprep.mubr.bf16.mxu0 0
        %1093 = vmatmul.mubr.bf16.gmra.mxu0 %v616
        %v1094 = vpop.f32.mrf.mxu0
        %v1095 = vadd.f32 %v450, %v1094
        %v1096 = vpop.f32.mrf.mxu0
        %v1097 = vpop.f32.mrf.mxu0
        %v1098 = vadd.f32 %v450, %v1097
        %v1099 = vpop.f32.mrf.mxu0
        %1100 = vmatprep.mubr.bf16.mxu0 0
        %1101 = vmatmul.mubr.bf16.gmra.mxu0 %v619
        %v1102 = vpop.f32.mrf.mxu0
        %v1103 = vadd.f32 %v450, %v1102
        %v1104 = vpop.f32.mrf.mxu0
        %v1105 = vpop.f32.mrf.mxu0
        %v1106 = vadd.f32 %v450, %v1105
        %v1107 = vpop.f32.mrf.mxu0
        %1108 = vmatprep.mubr.bf16.mxu0 0
        %1109 = vmatmul.mubr.bf16.gmra.mxu0 %v622
        %v1110 = vpop.f32.mrf.mxu0
        %v1111 = vadd.f32 %v450, %v1110
        %v1112 = vpop.f32.mrf.mxu0
        %v1113 = vpop.f32.mrf.mxu0
        %v1114 = vadd.f32 %v450, %v1113
        %v1115 = vpop.f32.mrf.mxu0
        %1116 = vmatprep.mubr.bf16.mxu0 0
        %1117 = vmatmul.mubr.bf16.gmra.mxu0 %v625
        %v1118 = vpop.f32.mrf.mxu0
        %v1119 = vadd.f32 %v450, %v1118
        %v1120 = vpop.f32.mrf.mxu0
        %v1121 = vpop.f32.mrf.mxu0
        %v1122 = vadd.f32 %v450, %v1121
        %v1123 = vpop.f32.mrf.mxu0
        %1124 = vmatprep.mubr.bf16.mxu0 0
        %1125 = vmatmul.mubr.bf16.gmra.mxu0 %v628
        %v1126 = vpop.f32.mrf.mxu0
        %v1127 = vadd.f32 %v450, %v1126
        %v1128 = vpop.f32.mrf.mxu0
        %v1129 = vpop.f32.mrf.mxu0
        %v1130 = vadd.f32 %v450, %v1129
        %v1131 = vpop.f32.mrf.mxu0
        %1132 = vmatprep.mubr.bf16.mxu0 0
        %1133 = vmatmul.mubr.bf16.gmra.mxu0 %v631
        %v1134 = vpop.f32.mrf.mxu0
        %v1135 = vadd.f32 %v450, %v1134
        %v1136 = vpop.f32.mrf.mxu0
        %v1137 = vpop.f32.mrf.mxu0
        %v1138 = vadd.f32 %v450, %v1137
        %v1139 = vpop.f32.mrf.mxu0
        %1140 = vmatprep.mubr.bf16.mxu0 0
        %1141 = vmatmul.mubr.bf16.gmra.mxu0 %v634
        %v1142 = vpop.f32.mrf.mxu0
        %v1143 = vadd.f32 %v450, %v1142
        %v1144 = vpop.f32.mrf.mxu0
        %v1145 = vpop.f32.mrf.mxu0
        %v1146 = vadd.f32 %v450, %v1145
        %v1147 = vpop.f32.mrf.mxu0
        %1148 = vmatprep.mubr.bf16.mxu0 0
        %1149 = vmatmul.mubr.bf16.gmra.mxu0 %v637
        %v1150 = vpop.f32.mrf.mxu0
        %v1151 = vadd.f32 %v450, %v1150
        %v1152 = vpop.f32.mrf.mxu0
        %v1153 = vpop.f32.mrf.mxu0
        %v1154 = vadd.f32 %v450, %v1153
        %v1155 = vpop.f32.mrf.mxu0
        %1156 = vmatprep.mubr.bf16.mxu0 0
        %1157 = vmatmul.mubr.bf16.gmra.mxu0 %v640
        %v1158 = vpop.f32.mrf.mxu0
        %v1159 = vadd.f32 %v450, %v1158
        %v1160 = vpop.f32.mrf.mxu0
        %v1161 = vpop.f32.mrf.mxu0
        %v1162 = vadd.f32 %v450, %v1161
        %v1163 = vpop.f32.mrf.mxu0
        %1164 = vmatprep.mubr.bf16.mxu0 0
        %1165 = vmatmul.mubr.bf16.gmra.mxu0 %v643
        %v1166 = vpop.f32.mrf.mxu0
        %v1167 = vadd.f32 %v450, %v1166
        %v1168 = vpop.f32.mrf.mxu0
        %v1169 = vpop.f32.mrf.mxu0
        %v1170 = vadd.f32 %v450, %v1169
        %v1171 = vpop.f32.mrf.mxu0
        %1172 = vmatprep.mubr.bf16.mxu0 0
        %1173 = vmatmul.mubr.bf16.gmra.mxu0 %v646
        %v1174 = vpop.f32.mrf.mxu0
        %v1175 = vadd.f32 %v450, %v1174
        %v1176 = vpop.f32.mrf.mxu0
        %v1177 = vpop.f32.mrf.mxu0
        %v1178 = vadd.f32 %v450, %v1177
        %v1179 = vpop.f32.mrf.mxu0
        %1180 = vmatprep.mubr.bf16.mxu0 0
        %1181 = vmatmul.mubr.bf16.gmra.mxu0 %v649
        %v1182 = vpop.f32.mrf.mxu0
        %v1183 = vadd.f32 %v450, %v1182
        %v1184 = vpop.f32.mrf.mxu0
        %v1185 = vpop.f32.mrf.mxu0
        %v1186 = vadd.f32 %v450, %v1185
        %v1187 = vpop.f32.mrf.mxu0
        %1188 = vmatprep.mubr.bf16.mxu0 0
        %1189 = vmatmul.mubr.bf16.gmra.mxu0 %v652
        %v1190 = vpop.f32.mrf.mxu0
        %v1191 = vadd.f32 %v450, %v1190
        %v1192 = vpop.f32.mrf.mxu0
        %v1193 = vpop.f32.mrf.mxu0
        %v1194 = vadd.f32 %v450, %v1193
        %v1195 = vpop.f32.mrf.mxu0
        %1196 = vmatprep.mubr.bf16.mxu0 0
        %1197 = vmatmul.mubr.bf16.gmra.mxu0 %v655
        %v1198 = vpop.f32.mrf.mxu0
        %v1199 = vadd.f32 %v450, %v1198
        %v1200 = vpop.f32.mrf.mxu0
        %v1201 = vpop.f32.mrf.mxu0
        %v1202 = vadd.f32 %v450, %v1201
        %v1203 = vpop.f32.mrf.mxu0
        %1204 = vmatprep.mubr.bf16.mxu0 0
        %1205 = vmatmul.mubr.bf16.gmra.mxu0 %v658
        %v1206 = vpop.f32.mrf.mxu0
        %v1207 = vadd.f32 %v450, %v1206
        %v1208 = vpop.f32.mrf.mxu0
        %v1209 = vpop.f32.mrf.mxu0
        %v1210 = vpop.f32.mrf.mxu0
        %1211 = vdwg.mxu0
        %v1212 = vmax.f32 %v695, 0.0
        %v1213 = vmax.f32 %v698, 0.0
        %v1214 = vmax.f32 %v703, 0.0
        %v1215 = vmax.f32 %v706, 0.0
        %v1216 = vmax.f32 %v711, 0.0
        %v1217 = vmax.f32 %v714, 0.0
        %v1218 = vmax.f32 %v719, 0.0
        %v1219 = vmax.f32 %v722, 0.0
        %v1220 = vmax.f32 %v727, 0.0
        %v1221 = vmax.f32 %v730, 0.0
        %v1222 = vmax.f32 %v735, 0.0
        %v1223 = vmax.f32 %v738, 0.0
        %v1224 = vmax.f32 %v743, 0.0
        %v1225 = vmax.f32 %v746, 0.0
        %v1226 = vmax.f32 %v751, 0.0
        %v1227 = vmax.f32 %v754, 0.0
        %v1228 = vmax.f32 %v759, 0.0
        %v1229 = vmax.f32 %v762, 0.0
        %v1230 = vmax.f32 %v767, 0.0
        %v1231 = vmax.f32 %v770, 0.0
        %v1232 = vmax.f32 %v775, 0.0
        %v1233 = vmax.f32 %v778, 0.0
        %v1234 = vmax.f32 %v783, 0.0
        %v1235 = vmax.f32 %v786, 0.0
        %v1236 = vmax.f32 %v791, 0.0
        %v1237 = vmax.f32 %v794, 0.0
        %v1238 = vmax.f32 %v799, 0.0
        %v1239 = vmax.f32 %v802, 0.0
        %v1240 = vmax.f32 %v807, 0.0
        %v1241 = vmax.f32 %v810, 0.0
        %v1242 = vmax.f32 %v815, 0.0
        %v1243 = vmax.f32 %v818, 0.0
        %v1244 = vmax.f32 %v823, 0.0
        %v1245 = vmax.f32 %v826, 0.0
        %v1246 = vmax.f32 %v831, 0.0
        %v1247 = vmax.f32 %v834, 0.0
        %v1248 = vmax.f32 %v839, 0.0
        %v1249 = vmax.f32 %v842, 0.0
        %v1250 = vmax.f32 %v847, 0.0
        %v1251 = vmax.f32 %v850, 0.0
        %v1252 = vmax.f32 %v855, 0.0
        %v1253 = vmax.f32 %v858, 0.0
        %v1254 = vmax.f32 %v863, 0.0
        %v1255 = vmax.f32 %v866, 0.0
        %v1256 = vmax.f32 %v871, 0.0
        %v1257 = vmax.f32 %v874, 0.0
        %v1258 = vmax.f32 %v879, 0.0
        %v1259 = vmax.f32 %v882, 0.0
        %v1260 = vmax.f32 %v887, 0.0
        %v1261 = vmax.f32 %v890, 0.0
        %v1262 = vmax.f32 %v895, 0.0
        %v1263 = vmax.f32 %v898, 0.0
        %v1264 = vmax.f32 %v903, 0.0
        %v1265 = vmax.f32 %v906, 0.0
        %v1266 = vmax.f32 %v911, 0.0
        %v1267 = vmax.f32 %v914, 0.0
        %v1268 = vmax.f32 %v919, 0.0
        %v1269 = vmax.f32 %v922, 0.0
        %v1270 = vmax.f32 %v927, 0.0
        %v1271 = vmax.f32 %v930, 0.0
        %v1272 = vmax.f32 %v935, 0.0
        %v1273 = vmax.f32 %v938, 0.0
        %v1274 = vmax.f32 %v943, 0.0
        %v1275 = vmax.f32 %v946, 0.0
        %v1276 = vmax.f32 %v951, 0.0
        %v1277 = vmax.f32 %v954, 0.0
        %v1278 = vmax.f32 %v959, 0.0
        %v1279 = vmax.f32 %v962, 0.0
        %v1280 = vmax.f32 %v967, 0.0
        %v1281 = vmax.f32 %v970, 0.0
        %v1282 = vmax.f32 %v975, 0.0
        %v1283 = vmax.f32 %v978, 0.0
        %v1284 = vmax.f32 %v983, 0.0
        %v1285 = vmax.f32 %v986, 0.0
        %v1286 = vmax.f32 %v991, 0.0
        %v1287 = vmax.f32 %v994, 0.0
        %v1288 = vmax.f32 %v999, 0.0
        %v1289 = vmax.f32 %v1002, 0.0
        %v1290 = vmax.f32 %v1007, 0.0
        %v1291 = vmax.f32 %v1010, 0.0
        %v1292 = vmax.f32 %v1015, 0.0
        %v1293 = vmax.f32 %v1018, 0.0
        %v1294 = vmax.f32 %v1023, 0.0
        %v1295 = vmax.f32 %v1026, 0.0
        %v1296 = vmax.f32 %v1031, 0.0
        %v1297 = vmax.f32 %v1034, 0.0
        %v1298 = vmax.f32 %v1039, 0.0
        %v1299 = vmax.f32 %v1042, 0.0
        %v1300 = vmax.f32 %v1047, 0.0
        %v1301 = vmax.f32 %v1050, 0.0
        %v1302 = vmax.f32 %v1055, 0.0
        %v1303 = vmax.f32 %v1058, 0.0
        %v1304 = vmax.f32 %v1063, 0.0
        %v1305 = vmax.f32 %v1066, 0.0
        %v1306 = vmax.f32 %v1071, 0.0
        %v1307 = vmax.f32 %v1074, 0.0
        %v1308 = vmax.f32 %v1079, 0.0
        %v1309 = vmax.f32 %v1082, 0.0
        %v1310 = vmax.f32 %v1087, 0.0
        %v1311 = vmax.f32 %v1090, 0.0
        %v1312 = vmax.f32 %v1095, 0.0
        %v1313 = vmax.f32 %v1098, 0.0
        %v1314 = vmax.f32 %v1103, 0.0
        %v1315 = vmax.f32 %v1106, 0.0
        %v1316 = vmax.f32 %v1111, 0.0
        %v1317 = vmax.f32 %v1114, 0.0
        %v1318 = vmax.f32 %v1119, 0.0
        %v1319 = vmax.f32 %v1122, 0.0
        %v1320 = vmax.f32 %v1127, 0.0
        %v1321 = vmax.f32 %v1130, 0.0
        %v1322 = vmax.f32 %v1135, 0.0
        %v1323 = vmax.f32 %v1138, 0.0
        %v1324 = vmax.f32 %v1143, 0.0
        %v1325 = vmax.f32 %v1146, 0.0
        %v1326 = vmax.f32 %v1151, 0.0
        %v1327 = vmax.f32 %v1154, 0.0
        %v1328 = vmax.f32 %v1159, 0.0
        %v1329 = vmax.f32 %v1162, 0.0
        %v1330 = vmax.f32 %v1167, 0.0
        %v1331 = vmax.f32 %v1170, 0.0
        %v1332 = vmax.f32 %v1175, 0.0
        %v1333 = vmax.f32 %v1178, 0.0
        %v1334 = vmax.f32 %v1183, 0.0
        %v1335 = vmax.f32 %v1186, 0.0
        %v1336 = vmax.f32 %v1191, 0.0
        %v1337 = vmax.f32 %v1194, 0.0
        %v1338 = vmax.f32 %v1199, 0.0
        %v1339 = vmax.f32 %v1202, 0.0
        %v1340 = vmax.f32 %v1207, 0.0
        %v1341 = vpack.c.bf16 %v1213, %v1212
        %v1342 = vpack.c.bf16 %v1215, %v1214
        %v1343 = vpack.c.bf16 %v1217, %v1216
        %v1344 = vpack.c.bf16 %v1219, %v1218
        %v1345 = vpack.c.bf16 %v1221, %v1220
        %v1346 = vpack.c.bf16 %v1223, %v1222
        %v1347 = vpack.c.bf16 %v1225, %v1224
        %v1348 = vpack.c.bf16 %v1227, %v1226
        %v1349 = vpack.c.bf16 %v1229, %v1228
        %v1350 = vpack.c.bf16 %v1231, %v1230
        %v1351 = vpack.c.bf16 %v1233, %v1232
        %v1352 = vpack.c.bf16 %v1235, %v1234
        %v1353 = vpack.c.bf16 %v1237, %v1236
        %v1354 = vpack.c.bf16 %v1239, %v1238
        %v1355 = vpack.c.bf16 %v1241, %v1240
        %v1356 = vpack.c.bf16 %v1243, %v1242
        %v1357 = vpack.c.bf16 %v1245, %v1244
        %v1358 = vpack.c.bf16 %v1247, %v1246
        %v1359 = vpack.c.bf16 %v1249, %v1248
        %v1360 = vpack.c.bf16 %v1251, %v1250
        %v1361 = vpack.c.bf16 %v1253, %v1252
        %v1362 = vpack.c.bf16 %v1255, %v1254
        %v1363 = vpack.c.bf16 %v1257, %v1256
        %v1364 = vpack.c.bf16 %v1259, %v1258
        %v1365 = vpack.c.bf16 %v1261, %v1260
        %v1366 = vpack.c.bf16 %v1263, %v1262
        %v1367 = vpack.c.bf16 %v1265, %v1264
        %v1368 = vpack.c.bf16 %v1267, %v1266
        %v1369 = vpack.c.bf16 %v1269, %v1268
        %v1370 = vpack.c.bf16 %v1271, %v1270
        %v1371 = vpack.c.bf16 %v1273, %v1272
        %v1372 = vpack.c.bf16 %v1275, %v1274
        %v1373 = vpack.c.bf16 %v1277, %v1276
        %v1374 = vpack.c.bf16 %v1279, %v1278
        %v1375 = vpack.c.bf16 %v1281, %v1280
        %v1376 = vpack.c.bf16 %v1283, %v1282
        %v1377 = vpack.c.bf16 %v1285, %v1284
        %v1378 = vpack.c.bf16 %v1287, %v1286
        %v1379 = vpack.c.bf16 %v1289, %v1288
        %v1380 = vpack.c.bf16 %v1291, %v1290
        %v1381 = vpack.c.bf16 %v1293, %v1292
        %v1382 = vpack.c.bf16 %v1295, %v1294
        %v1383 = vpack.c.bf16 %v1297, %v1296
        %v1384 = vpack.c.bf16 %v1299, %v1298
        %v1385 = vpack.c.bf16 %v1301, %v1300
        %v1386 = vpack.c.bf16 %v1303, %v1302
        %v1387 = vpack.c.bf16 %v1305, %v1304
        %v1388 = vpack.c.bf16 %v1307, %v1306
        %v1389 = vpack.c.bf16 %v1309, %v1308
        %v1390 = vpack.c.bf16 %v1311, %v1310
        %v1391 = vpack.c.bf16 %v1313, %v1312
        %v1392 = vpack.c.bf16 %v1315, %v1314
        %v1393 = vpack.c.bf16 %v1317, %v1316
        %v1394 = vpack.c.bf16 %v1319, %v1318
        %v1395 = vpack.c.bf16 %v1321, %v1320
        %v1396 = vpack.c.bf16 %v1323, %v1322
        %v1397 = vpack.c.bf16 %v1325, %v1324
        %v1398 = vpack.c.bf16 %v1327, %v1326
        %v1399 = vpack.c.bf16 %v1329, %v1328
        %v1400 = vpack.c.bf16 %v1331, %v1330
        %v1401 = vpack.c.bf16 %v1333, %v1332
        %v1402 = vpack.c.bf16 %v1335, %v1334
        %v1403 = vpack.c.bf16 %v1337, %v1336
        %v1404 = vpack.c.bf16 %v1339, %v1338
        %v1405 = vpack.c.bf16 %v1340, %v1340
        %v1406 = vld [vmem:[%s3] sm:$0xf]
        %v1407 = vld [vmem:[%s3 + $0x4] sm:$0xf]
        %v1408 = vld [vmem:[%s3 + $0x8] sm:$0xf]
        %v1409 = vld [vmem:[%s3 + $0xc] sm:$0xf]
        %v1410 = vld [vmem:[%s3 + $0x10] sm:$0xf]
        %v1411 = vld [vmem:[%s3 + $0x14] sm:$0xf]
        %v1412 = vld [vmem:[%s3 + $0x18] sm:$0xf]
        %v1413 = vld [vmem:[%s3 + $0x1c] sm:$0xf]
        %v1414 = vld [vmem:[%s3 + $0x20] sm:$0xf]
        %v1415 = vld [vmem:[%s3 + $0x24] sm:$0xf]
        %v1416 = vld [vmem:[%s3 + $0x28] sm:$0xf]
        %v1417 = vld [vmem:[%s3 + $0x2c] sm:$0xf]
        %v1418 = vld [vmem:[%s3 + $0x30] sm:$0xf]
        %v1419 = vld [vmem:[%s3 + $0x34] sm:$0xf]
        %v1420 = vld [vmem:[%s3 + $0x38] sm:$0xf]
        %v1421 = vld [vmem:[%s3 + $0x3c] sm:$0xf]
        %v1422 = vld [vmem:[%s4] sm:$0x1]
        %v1424 = vlaneseq
        %v1425 = vshrl.u32 %v1424, 7
        %v1426 = vsub.s32 0, %v1425
        %v1427 = vrot.slane %v1422, %v1426
        %v1445 = vunpack.c.l.b16 %v1406
        %v1446 = vunpack.c.l.b16 %v1407
        %v1447 = vunpack.c.l.b16 %v1408
        %v1448 = vunpack.c.l.b16 %v1409
        %v1449 = vunpack.c.l.b16 %v1410
        %v1450 = vunpack.c.l.b16 %v1411
        %v1451 = vunpack.c.l.b16 %v1412
        %v1452 = vunpack.c.l.b16 %v1413
        %v1453 = vunpack.c.l.b16 %v1414
        %v1454 = vunpack.c.l.b16 %v1415
        %v1455 = vunpack.c.l.b16 %v1416
        %v1456 = vunpack.c.l.b16 %v1417
        %v1457 = vunpack.c.l.b16 %v1418
        %v1458 = vunpack.c.l.b16 %v1419
        %v1459 = vunpack.c.l.b16 %v1420
        %v1460 = vunpack.c.l.b16 %v1421
        %v1461 = vpack.c.b16 %v1446, %v1445
        %v1462 = vpack.c.b16 %v1448, %v1447
        %v1463 = vpack.c.b16 %v1450, %v1449
        %v1464 = vpack.c.b16 %v1452, %v1451
        %v1465 = vpack.c.b16 %v1454, %v1453
        %v1466 = vpack.c.b16 %v1456, %v1455
        %v1467 = vpack.c.b16 %v1458, %v1457
        %v1468 = vpack.c.b16 %v1460, %v1459
        %1477 = vmatprep.subr.bf16.mxu0 0
        %1478 = vmatpush1.bf16.msra.mxu0 %v1468
        %1479 = vmatprep.subr.bf16.mxu0 0
        %1480 = vmatpush1.bf16.msra.mxu0 %v1467
        %1481 = vmatprep.subr.bf16.mxu0 0
        %1482 = vmatpush1.bf16.msra.mxu0 %v1466
        %1483 = vmatprep.subr.bf16.mxu0 0
        %1484 = vmatpush1.bf16.msra.mxu0 %v1465
        %1485 = vmatprep.subr.bf16.mxu0 0
        %1486 = vmatpush1.bf16.msra.mxu0 %v1464
        %1487 = vmatprep.subr.bf16.mxu0 0
        %1488 = vmatpush1.bf16.msra.mxu0 %v1463
        %1489 = vmatprep.subr.bf16.mxu0 0
        %1490 = vmatpush1.bf16.msra.mxu0 %v1462
        %1491 = vmatprep.subr.bf16.mxu0 0
        %1492 = vmatpush1.bf16.msra.mxu0 %v1461
        %1493 = vmatprep.subr.bf16.mxu0 0
        %1494 = vmatpush2.bf16.msra.mxu0 0
        %1495 = vmatprep.subr.bf16.mxu0 0
        %1496 = vmatpush2.bf16.msra.mxu0 0
        %1497 = vmatprep.subr.bf16.mxu0 0
        %1498 = vmatpush2.bf16.msra.mxu0 0
        %1499 = vmatprep.subr.bf16.mxu0 0
        %1500 = vmatpush2.bf16.msra.mxu0 0
        %1501 = vmatprep.subr.bf16.mxu0 0
        %1502 = vmatpush2.bf16.msra.mxu0 0
        %1503 = vmatprep.subr.bf16.mxu0 0
        %1504 = vmatpush2.bf16.msra.mxu0 0
        %1505 = vmatprep.subr.bf16.mxu0 0
        %1506 = vmatpush2.bf16.msra.mxu0 0
        %1507 = vmatprep.subr.bf16.mxu0 0
        %1508 = vmatpush2.bf16.msra.mxu0 0
        %1509 = vmatprep.mubr.bf16.mxu0 0
        %1510 = vmatmul.mubr.bf16.gmra.mxu0 %v1341
        %v1511 = vpop.f32.mrf.mxu0
        %v1512 = vadd.f32 %v1427, %v1511
        %v1513 = vpop.f32.mrf.mxu0
        %v1514 = vpop.f32.mrf.mxu0
        %v1515 = vadd.f32 %v1427, %v1514
        %v1516 = vpop.f32.mrf.mxu0
        %1517 = vmatprep.mubr.bf16.mxu0 0
        %1518 = vmatmul.mubr.bf16.gmra.mxu0 %v1342
        %v1519 = vpop.f32.mrf.mxu0
        %v1520 = vadd.f32 %v1427, %v1519
        %v1521 = vpop.f32.mrf.mxu0
        %v1522 = vpop.f32.mrf.mxu0
        %v1523 = vadd.f32 %v1427, %v1522
        %v1524 = vpop.f32.mrf.mxu0
        %1525 = vmatprep.mubr.bf16.mxu0 0
        %1526 = vmatmul.mubr.bf16.gmra.mxu0 %v1343
        %v1527 = vpop.f32.mrf.mxu0
        %v1528 = vadd.f32 %v1427, %v1527
        %v1529 = vpop.f32.mrf.mxu0
        %v1530 = vpop.f32.mrf.mxu0
        %v1531 = vadd.f32 %v1427, %v1530
        %v1532 = vpop.f32.mrf.mxu0
        %1533 = vmatprep.mubr.bf16.mxu0 0
        %1534 = vmatmul.mubr.bf16.gmra.mxu0 %v1344
        %v1535 = vpop.f32.mrf.mxu0
        %v1536 = vadd.f32 %v1427, %v1535
        %v1537 = vpop.f32.mrf.mxu0
        %v1538 = vpop.f32.mrf.mxu0
        %v1539 = vadd.f32 %v1427, %v1538
        %v1540 = vpop.f32.mrf.mxu0
        %1541 = vmatprep.mubr.bf16.mxu0 0
        %1542 = vmatmul.mubr.bf16.gmra.mxu0 %v1345
        %v1543 = vpop.f32.mrf.mxu0
        %v1544 = vadd.f32 %v1427, %v1543
        %v1545 = vpop.f32.mrf.mxu0
        %v1546 = vpop.f32.mrf.mxu0
        %v1547 = vadd.f32 %v1427, %v1546
        %v1548 = vpop.f32.mrf.mxu0
        %1549 = vmatprep.mubr.bf16.mxu0 0
        %1550 = vmatmul.mubr.bf16.gmra.mxu0 %v1346
        %v1551 = vpop.f32.mrf.mxu0
        %v1552 = vadd.f32 %v1427, %v1551
        %v1553 = vpop.f32.mrf.mxu0
        %v1554 = vpop.f32.mrf.mxu0
        %v1555 = vadd.f32 %v1427, %v1554
        %v1556 = vpop.f32.mrf.mxu0
        %1557 = vmatprep.mubr.bf16.mxu0 0
        %1558 = vmatmul.mubr.bf16.gmra.mxu0 %v1347
        %v1559 = vpop.f32.mrf.mxu0
        %v1560 = vadd.f32 %v1427, %v1559
        %v1561 = vpop.f32.mrf.mxu0
        %v1562 = vpop.f32.mrf.mxu0
        %v1563 = vadd.f32 %v1427, %v1562
        %v1564 = vpop.f32.mrf.mxu0
        %1565 = vmatprep.mubr.bf16.mxu0 0
        %1566 = vmatmul.mubr.bf16.gmra.mxu0 %v1348
        %v1567 = vpop.f32.mrf.mxu0
        %v1568 = vadd.f32 %v1427, %v1567
        %v1569 = vpop.f32.mrf.mxu0
        %v1570 = vpop.f32.mrf.mxu0
        %v1571 = vadd.f32 %v1427, %v1570
        %v1572 = vpop.f32.mrf.mxu0
        %1573 = vmatprep.mubr.bf16.mxu0 0
        %1574 = vmatmul.mubr.bf16.gmra.mxu0 %v1349
        %v1575 = vpop.f32.mrf.mxu0
        %v1576 = vadd.f32 %v1427, %v1575
        %v1577 = vpop.f32.mrf.mxu0
        %v1578 = vpop.f32.mrf.mxu0
        %v1579 = vadd.f32 %v1427, %v1578
        %v1580 = vpop.f32.mrf.mxu0
        %1581 = vmatprep.mubr.bf16.mxu0 0
        %1582 = vmatmul.mubr.bf16.gmra.mxu0 %v1350
        %v1583 = vpop.f32.mrf.mxu0
        %v1584 = vadd.f32 %v1427, %v1583
        %v1585 = vpop.f32.mrf.mxu0
        %v1586 = vpop.f32.mrf.mxu0
        %v1587 = vadd.f32 %v1427, %v1586
        %v1588 = vpop.f32.mrf.mxu0
        %1589 = vmatprep.mubr.bf16.mxu0 0
        %1590 = vmatmul.mubr.bf16.gmra.mxu0 %v1351
        %v1591 = vpop.f32.mrf.mxu0
        %v1592 = vadd.f32 %v1427, %v1591
        %v1593 = vpop.f32.mrf.mxu0
        %v1594 = vpop.f32.mrf.mxu0
        %v1595 = vadd.f32 %v1427, %v1594
        %v1596 = vpop.f32.mrf.mxu0
        %1597 = vmatprep.mubr.bf16.mxu0 0
        %1598 = vmatmul.mubr.bf16.gmra.mxu0 %v1352
        %v1599 = vpop.f32.mrf.mxu0
        %v1600 = vadd.f32 %v1427, %v1599
        %v1601 = vpop.f32.mrf.mxu0
        %v1602 = vpop.f32.mrf.mxu0
        %v1603 = vadd.f32 %v1427, %v1602
        %v1604 = vpop.f32.mrf.mxu0
        %1605 = vmatprep.mubr.bf16.mxu0 0
        %1606 = vmatmul.mubr.bf16.gmra.mxu0 %v1353
        %v1607 = vpop.f32.mrf.mxu0
        %v1608 = vadd.f32 %v1427, %v1607
        %v1609 = vpop.f32.mrf.mxu0
        %v1610 = vpop.f32.mrf.mxu0
        %v1611 = vadd.f32 %v1427, %v1610
        %v1612 = vpop.f32.mrf.mxu0
        %1613 = vmatprep.mubr.bf16.mxu0 0
        %1614 = vmatmul.mubr.bf16.gmra.mxu0 %v1354
        %v1615 = vpop.f32.mrf.mxu0
        %v1616 = vadd.f32 %v1427, %v1615
        %v1617 = vpop.f32.mrf.mxu0
        %v1618 = vpop.f32.mrf.mxu0
        %v1619 = vadd.f32 %v1427, %v1618
        %v1620 = vpop.f32.mrf.mxu0
        %1621 = vmatprep.mubr.bf16.mxu0 0
        %1622 = vmatmul.mubr.bf16.gmra.mxu0 %v1355
        %v1623 = vpop.f32.mrf.mxu0
        %v1624 = vadd.f32 %v1427, %v1623
        %v1625 = vpop.f32.mrf.mxu0
        %v1626 = vpop.f32.mrf.mxu0
        %v1627 = vadd.f32 %v1427, %v1626
        %v1628 = vpop.f32.mrf.mxu0
        %1629 = vmatprep.mubr.bf16.mxu0 0
        %1630 = vmatmul.mubr.bf16.gmra.mxu0 %v1356
        %v1631 = vpop.f32.mrf.mxu0
        %v1632 = vadd.f32 %v1427, %v1631
        %v1633 = vpop.f32.mrf.mxu0
        %v1634 = vpop.f32.mrf.mxu0
        %v1635 = vadd.f32 %v1427, %v1634
        %v1636 = vpop.f32.mrf.mxu0
        %1637 = vmatprep.mubr.bf16.mxu0 0
        %1638 = vmatmul.mubr.bf16.gmra.mxu0 %v1357
        %v1639 = vpop.f32.mrf.mxu0
        %v1640 = vadd.f32 %v1427, %v1639
        %v1641 = vpop.f32.mrf.mxu0
        %v1642 = vpop.f32.mrf.mxu0
        %v1643 = vadd.f32 %v1427, %v1642
        %v1644 = vpop.f32.mrf.mxu0
        %1645 = vmatprep.mubr.bf16.mxu0 0
        %1646 = vmatmul.mubr.bf16.gmra.mxu0 %v1358
        %v1647 = vpop.f32.mrf.mxu0
        %v1648 = vadd.f32 %v1427, %v1647
        %v1649 = vpop.f32.mrf.mxu0
        %v1650 = vpop.f32.mrf.mxu0
        %v1651 = vadd.f32 %v1427, %v1650
        %v1652 = vpop.f32.mrf.mxu0
        %1653 = vmatprep.mubr.bf16.mxu0 0
        %1654 = vmatmul.mubr.bf16.gmra.mxu0 %v1359
        %v1655 = vpop.f32.mrf.mxu0
        %v1656 = vadd.f32 %v1427, %v1655
        %v1657 = vpop.f32.mrf.mxu0
        %v1658 = vpop.f32.mrf.mxu0
        %v1659 = vadd.f32 %v1427, %v1658
        %v1660 = vpop.f32.mrf.mxu0
        %1661 = vmatprep.mubr.bf16.mxu0 0
        %1662 = vmatmul.mubr.bf16.gmra.mxu0 %v1360
        %v1663 = vpop.f32.mrf.mxu0
        %v1664 = vadd.f32 %v1427, %v1663
        %v1665 = vpop.f32.mrf.mxu0
        %v1666 = vpop.f32.mrf.mxu0
        %v1667 = vadd.f32 %v1427, %v1666
        %v1668 = vpop.f32.mrf.mxu0
        %1669 = vmatprep.mubr.bf16.mxu0 0
        %1670 = vmatmul.mubr.bf16.gmra.mxu0 %v1361
        %v1671 = vpop.f32.mrf.mxu0
        %v1672 = vadd.f32 %v1427, %v1671
        %v1673 = vpop.f32.mrf.mxu0
        %v1674 = vpop.f32.mrf.mxu0
        %v1675 = vadd.f32 %v1427, %v1674
        %v1676 = vpop.f32.mrf.mxu0
        %1677 = vmatprep.mubr.bf16.mxu0 0
        %1678 = vmatmul.mubr.bf16.gmra.mxu0 %v1362
        %v1679 = vpop.f32.mrf.mxu0
        %v1680 = vadd.f32 %v1427, %v1679
        %v1681 = vpop.f32.mrf.mxu0
        %v1682 = vpop.f32.mrf.mxu0
        %v1683 = vadd.f32 %v1427, %v1682
        %v1684 = vpop.f32.mrf.mxu0
        %1685 = vmatprep.mubr.bf16.mxu0 0
        %1686 = vmatmul.mubr.bf16.gmra.mxu0 %v1363
        %v1687 = vpop.f32.mrf.mxu0
        %v1688 = vadd.f32 %v1427, %v1687
        %v1689 = vpop.f32.mrf.mxu0
        %v1690 = vpop.f32.mrf.mxu0
        %v1691 = vadd.f32 %v1427, %v1690
        %v1692 = vpop.f32.mrf.mxu0
        %1693 = vmatprep.mubr.bf16.mxu0 0
        %1694 = vmatmul.mubr.bf16.gmra.mxu0 %v1364
        %v1695 = vpop.f32.mrf.mxu0
        %v1696 = vadd.f32 %v1427, %v1695
        %v1697 = vpop.f32.mrf.mxu0
        %v1698 = vpop.f32.mrf.mxu0
        %v1699 = vadd.f32 %v1427, %v1698
        %v1700 = vpop.f32.mrf.mxu0
        %1701 = vmatprep.mubr.bf16.mxu0 0
        %1702 = vmatmul.mubr.bf16.gmra.mxu0 %v1365
        %v1703 = vpop.f32.mrf.mxu0
        %v1704 = vadd.f32 %v1427, %v1703
        %v1705 = vpop.f32.mrf.mxu0
        %v1706 = vpop.f32.mrf.mxu0
        %v1707 = vadd.f32 %v1427, %v1706
        %v1708 = vpop.f32.mrf.mxu0
        %1709 = vmatprep.mubr.bf16.mxu0 0
        %1710 = vmatmul.mubr.bf16.gmra.mxu0 %v1366
        %v1711 = vpop.f32.mrf.mxu0
        %v1712 = vadd.f32 %v1427, %v1711
        %v1713 = vpop.f32.mrf.mxu0
        %v1714 = vpop.f32.mrf.mxu0
        %v1715 = vadd.f32 %v1427, %v1714
        %v1716 = vpop.f32.mrf.mxu0
        %1717 = vmatprep.mubr.bf16.mxu0 0
        %1718 = vmatmul.mubr.bf16.gmra.mxu0 %v1367
        %v1719 = vpop.f32.mrf.mxu0
        %v1720 = vadd.f32 %v1427, %v1719
        %v1721 = vpop.f32.mrf.mxu0
        %v1722 = vpop.f32.mrf.mxu0
        %v1723 = vadd.f32 %v1427, %v1722
        %v1724 = vpop.f32.mrf.mxu0
        %1725 = vmatprep.mubr.bf16.mxu0 0
        %1726 = vmatmul.mubr.bf16.gmra.mxu0 %v1368
        %v1727 = vpop.f32.mrf.mxu0
        %v1728 = vadd.f32 %v1427, %v1727
        %v1729 = vpop.f32.mrf.mxu0
        %v1730 = vpop.f32.mrf.mxu0
        %v1731 = vadd.f32 %v1427, %v1730
        %v1732 = vpop.f32.mrf.mxu0
        %1733 = vmatprep.mubr.bf16.mxu0 0
        %1734 = vmatmul.mubr.bf16.gmra.mxu0 %v1369
        %v1735 = vpop.f32.mrf.mxu0
        %v1736 = vadd.f32 %v1427, %v1735
        %v1737 = vpop.f32.mrf.mxu0
        %v1738 = vpop.f32.mrf.mxu0
        %v1739 = vadd.f32 %v1427, %v1738
        %v1740 = vpop.f32.mrf.mxu0
        %1741 = vmatprep.mubr.bf16.mxu0 0
        %1742 = vmatmul.mubr.bf16.gmra.mxu0 %v1370
        %v1743 = vpop.f32.mrf.mxu0
        %v1744 = vadd.f32 %v1427, %v1743
        %v1745 = vpop.f32.mrf.mxu0
        %v1746 = vpop.f32.mrf.mxu0
        %v1747 = vadd.f32 %v1427, %v1746
        %v1748 = vpop.f32.mrf.mxu0
        %1749 = vmatprep.mubr.bf16.mxu0 0
        %1750 = vmatmul.mubr.bf16.gmra.mxu0 %v1371
        %v1751 = vpop.f32.mrf.mxu0
        %v1752 = vadd.f32 %v1427, %v1751
        %v1753 = vpop.f32.mrf.mxu0
        %v1754 = vpop.f32.mrf.mxu0
        %v1755 = vadd.f32 %v1427, %v1754
        %v1756 = vpop.f32.mrf.mxu0
        %1757 = vmatprep.mubr.bf16.mxu0 0
        %1758 = vmatmul.mubr.bf16.gmra.mxu0 %v1372
        %v1759 = vpop.f32.mrf.mxu0
        %v1760 = vadd.f32 %v1427, %v1759
        %v1761 = vpop.f32.mrf.mxu0
        %v1762 = vpop.f32.mrf.mxu0
        %v1763 = vadd.f32 %v1427, %v1762
        %v1764 = vpop.f32.mrf.mxu0
        %1765 = vmatprep.mubr.bf16.mxu0 0
        %1766 = vmatmul.mubr.bf16.gmra.mxu0 %v1373
        %v1767 = vpop.f32.mrf.mxu0
        %v1768 = vadd.f32 %v1427, %v1767
        %v1769 = vpop.f32.mrf.mxu0
        %v1770 = vpop.f32.mrf.mxu0
        %v1771 = vadd.f32 %v1427, %v1770
        %v1772 = vpop.f32.mrf.mxu0
        %1773 = vmatprep.mubr.bf16.mxu0 0
        %1774 = vmatmul.mubr.bf16.gmra.mxu0 %v1374
        %v1775 = vpop.f32.mrf.mxu0
        %v1776 = vadd.f32 %v1427, %v1775
        %v1777 = vpop.f32.mrf.mxu0
        %v1778 = vpop.f32.mrf.mxu0
        %v1779 = vadd.f32 %v1427, %v1778
        %v1780 = vpop.f32.mrf.mxu0
        %1781 = vmatprep.mubr.bf16.mxu0 0
        %1782 = vmatmul.mubr.bf16.gmra.mxu0 %v1375
        %v1783 = vpop.f32.mrf.mxu0
        %v1784 = vadd.f32 %v1427, %v1783
        %v1785 = vpop.f32.mrf.mxu0
        %v1786 = vpop.f32.mrf.mxu0
        %v1787 = vadd.f32 %v1427, %v1786
        %v1788 = vpop.f32.mrf.mxu0
        %1789 = vmatprep.mubr.bf16.mxu0 0
        %1790 = vmatmul.mubr.bf16.gmra.mxu0 %v1376
        %v1791 = vpop.f32.mrf.mxu0
        %v1792 = vadd.f32 %v1427, %v1791
        %v1793 = vpop.f32.mrf.mxu0
        %v1794 = vpop.f32.mrf.mxu0
        %v1795 = vadd.f32 %v1427, %v1794
        %v1796 = vpop.f32.mrf.mxu0
        %1797 = vmatprep.mubr.bf16.mxu0 0
        %1798 = vmatmul.mubr.bf16.gmra.mxu0 %v1377
        %v1799 = vpop.f32.mrf.mxu0
        %v1800 = vadd.f32 %v1427, %v1799
        %v1801 = vpop.f32.mrf.mxu0
        %v1802 = vpop.f32.mrf.mxu0
        %v1803 = vadd.f32 %v1427, %v1802
        %v1804 = vpop.f32.mrf.mxu0
        %1805 = vmatprep.mubr.bf16.mxu0 0
        %1806 = vmatmul.mubr.bf16.gmra.mxu0 %v1378
        %v1807 = vpop.f32.mrf.mxu0
        %v1808 = vadd.f32 %v1427, %v1807
        %v1809 = vpop.f32.mrf.mxu0
        %v1810 = vpop.f32.mrf.mxu0
        %v1811 = vadd.f32 %v1427, %v1810
        %v1812 = vpop.f32.mrf.mxu0
        %1813 = vmatprep.mubr.bf16.mxu0 0
        %1814 = vmatmul.mubr.bf16.gmra.mxu0 %v1379
        %v1815 = vpop.f32.mrf.mxu0
        %v1816 = vadd.f32 %v1427, %v1815
        %v1817 = vpop.f32.mrf.mxu0
        %v1818 = vpop.f32.mrf.mxu0
        %v1819 = vadd.f32 %v1427, %v1818
        %v1820 = vpop.f32.mrf.mxu0
        %1821 = vmatprep.mubr.bf16.mxu0 0
        %1822 = vmatmul.mubr.bf16.gmra.mxu0 %v1380
        %v1823 = vpop.f32.mrf.mxu0
        %v1824 = vadd.f32 %v1427, %v1823
        %v1825 = vpop.f32.mrf.mxu0
        %v1826 = vpop.f32.mrf.mxu0
        %v1827 = vadd.f32 %v1427, %v1826
        %v1828 = vpop.f32.mrf.mxu0
        %1829 = vmatprep.mubr.bf16.mxu0 0
        %1830 = vmatmul.mubr.bf16.gmra.mxu0 %v1381
        %v1831 = vpop.f32.mrf.mxu0
        %v1832 = vadd.f32 %v1427, %v1831
        %v1833 = vpop.f32.mrf.mxu0
        %v1834 = vpop.f32.mrf.mxu0
        %v1835 = vadd.f32 %v1427, %v1834
        %v1836 = vpop.f32.mrf.mxu0
        %1837 = vmatprep.mubr.bf16.mxu0 0
        %1838 = vmatmul.mubr.bf16.gmra.mxu0 %v1382
        %v1839 = vpop.f32.mrf.mxu0
        %v1840 = vadd.f32 %v1427, %v1839
        %v1841 = vpop.f32.mrf.mxu0
        %v1842 = vpop.f32.mrf.mxu0
        %v1843 = vadd.f32 %v1427, %v1842
        %v1844 = vpop.f32.mrf.mxu0
        %1845 = vmatprep.mubr.bf16.mxu0 0
        %1846 = vmatmul.mubr.bf16.gmra.mxu0 %v1383
        %v1847 = vpop.f32.mrf.mxu0
        %v1848 = vadd.f32 %v1427, %v1847
        %v1849 = vpop.f32.mrf.mxu0
        %v1850 = vpop.f32.mrf.mxu0
        %v1851 = vadd.f32 %v1427, %v1850
        %v1852 = vpop.f32.mrf.mxu0
        %1853 = vmatprep.mubr.bf16.mxu0 0
        %1854 = vmatmul.mubr.bf16.gmra.mxu0 %v1384
        %v1855 = vpop.f32.mrf.mxu0
        %v1856 = vadd.f32 %v1427, %v1855
        %v1857 = vpop.f32.mrf.mxu0
        %v1858 = vpop.f32.mrf.mxu0
        %v1859 = vadd.f32 %v1427, %v1858
        %v1860 = vpop.f32.mrf.mxu0
        %1861 = vmatprep.mubr.bf16.mxu0 0
        %1862 = vmatmul.mubr.bf16.gmra.mxu0 %v1385
        %v1863 = vpop.f32.mrf.mxu0
        %v1864 = vadd.f32 %v1427, %v1863
        %v1865 = vpop.f32.mrf.mxu0
        %v1866 = vpop.f32.mrf.mxu0
        %v1867 = vadd.f32 %v1427, %v1866
        %v1868 = vpop.f32.mrf.mxu0
        %1869 = vmatprep.mubr.bf16.mxu0 0
        %1870 = vmatmul.mubr.bf16.gmra.mxu0 %v1386
        %v1871 = vpop.f32.mrf.mxu0
        %v1872 = vadd.f32 %v1427, %v1871
        %v1873 = vpop.f32.mrf.mxu0
        %v1874 = vpop.f32.mrf.mxu0
        %v1875 = vadd.f32 %v1427, %v1874
        %v1876 = vpop.f32.mrf.mxu0
        %1877 = vmatprep.mubr.bf16.mxu0 0
        %1878 = vmatmul.mubr.bf16.gmra.mxu0 %v1387
        %v1879 = vpop.f32.mrf.mxu0
        %v1880 = vadd.f32 %v1427, %v1879
        %v1881 = vpop.f32.mrf.mxu0
        %v1882 = vpop.f32.mrf.mxu0
        %v1883 = vadd.f32 %v1427, %v1882
        %v1884 = vpop.f32.mrf.mxu0
        %1885 = vmatprep.mubr.bf16.mxu0 0
        %1886 = vmatmul.mubr.bf16.gmra.mxu0 %v1388
        %v1887 = vpop.f32.mrf.mxu0
        %v1888 = vadd.f32 %v1427, %v1887
        %v1889 = vpop.f32.mrf.mxu0
        %v1890 = vpop.f32.mrf.mxu0
        %v1891 = vadd.f32 %v1427, %v1890
        %v1892 = vpop.f32.mrf.mxu0
        %1893 = vmatprep.mubr.bf16.mxu0 0
        %1894 = vmatmul.mubr.bf16.gmra.mxu0 %v1389
        %v1895 = vpop.f32.mrf.mxu0
        %v1896 = vadd.f32 %v1427, %v1895
        %v1897 = vpop.f32.mrf.mxu0
        %v1898 = vpop.f32.mrf.mxu0
        %v1899 = vadd.f32 %v1427, %v1898
        %v1900 = vpop.f32.mrf.mxu0
        %1901 = vmatprep.mubr.bf16.mxu0 0
        %1902 = vmatmul.mubr.bf16.gmra.mxu0 %v1390
        %v1903 = vpop.f32.mrf.mxu0
        %v1904 = vadd.f32 %v1427, %v1903
        %v1905 = vpop.f32.mrf.mxu0
        %v1906 = vpop.f32.mrf.mxu0
        %v1907 = vadd.f32 %v1427, %v1906
        %v1908 = vpop.f32.mrf.mxu0
        %1909 = vmatprep.mubr.bf16.mxu0 0
        %1910 = vmatmul.mubr.bf16.gmra.mxu0 %v1391
        %v1911 = vpop.f32.mrf.mxu0
        %v1912 = vadd.f32 %v1427, %v1911
        %v1913 = vpop.f32.mrf.mxu0
        %v1914 = vpop.f32.mrf.mxu0
        %v1915 = vadd.f32 %v1427, %v1914
        %v1916 = vpop.f32.mrf.mxu0
        %1917 = vmatprep.mubr.bf16.mxu0 0
        %1918 = vmatmul.mubr.bf16.gmra.mxu0 %v1392
        %v1919 = vpop.f32.mrf.mxu0
        %v1920 = vadd.f32 %v1427, %v1919
        %v1921 = vpop.f32.mrf.mxu0
        %v1922 = vpop.f32.mrf.mxu0
        %v1923 = vadd.f32 %v1427, %v1922
        %v1924 = vpop.f32.mrf.mxu0
        %1925 = vmatprep.mubr.bf16.mxu0 0
        %1926 = vmatmul.mubr.bf16.gmra.mxu0 %v1393
        %v1927 = vpop.f32.mrf.mxu0
        %v1928 = vadd.f32 %v1427, %v1927
        %v1929 = vpop.f32.mrf.mxu0
        %v1930 = vpop.f32.mrf.mxu0
        %v1931 = vadd.f32 %v1427, %v1930
        %v1932 = vpop.f32.mrf.mxu0
        %1933 = vmatprep.mubr.bf16.mxu0 0
        %1934 = vmatmul.mubr.bf16.gmra.mxu0 %v1394
        %v1935 = vpop.f32.mrf.mxu0
        %v1936 = vadd.f32 %v1427, %v1935
        %v1937 = vpop.f32.mrf.mxu0
        %v1938 = vpop.f32.mrf.mxu0
        %v1939 = vadd.f32 %v1427, %v1938
        %v1940 = vpop.f32.mrf.mxu0
        %1941 = vmatprep.mubr.bf16.mxu0 0
        %1942 = vmatmul.mubr.bf16.gmra.mxu0 %v1395
        %v1943 = vpop.f32.mrf.mxu0
        %v1944 = vadd.f32 %v1427, %v1943
        %v1945 = vpop.f32.mrf.mxu0
        %v1946 = vpop.f32.mrf.mxu0
        %v1947 = vadd.f32 %v1427, %v1946
        %v1948 = vpop.f32.mrf.mxu0
        %1949 = vmatprep.mubr.bf16.mxu0 0
        %1950 = vmatmul.mubr.bf16.gmra.mxu0 %v1396
        %v1951 = vpop.f32.mrf.mxu0
        %v1952 = vadd.f32 %v1427, %v1951
        %v1953 = vpop.f32.mrf.mxu0
        %v1954 = vpop.f32.mrf.mxu0
        %v1955 = vadd.f32 %v1427, %v1954
        %v1956 = vpop.f32.mrf.mxu0
        %1957 = vmatprep.mubr.bf16.mxu0 0
        %1958 = vmatmul.mubr.bf16.gmra.mxu0 %v1397
        %v1959 = vpop.f32.mrf.mxu0
        %v1960 = vadd.f32 %v1427, %v1959
        %v1961 = vpop.f32.mrf.mxu0
        %v1962 = vpop.f32.mrf.mxu0
        %v1963 = vadd.f32 %v1427, %v1962
        %v1964 = vpop.f32.mrf.mxu0
        %1965 = vmatprep.mubr.bf16.mxu0 0
        %1966 = vmatmul.mubr.bf16.gmra.mxu0 %v1398
        %v1967 = vpop.f32.mrf.mxu0
        %v1968 = vadd.f32 %v1427, %v1967
        %v1969 = vpop.f32.mrf.mxu0
        %v1970 = vpop.f32.mrf.mxu0
        %v1971 = vadd.f32 %v1427, %v1970
        %v1972 = vpop.f32.mrf.mxu0
        %1973 = vmatprep.mubr.bf16.mxu0 0
        %1974 = vmatmul.mubr.bf16.gmra.mxu0 %v1399
        %v1975 = vpop.f32.mrf.mxu0
        %v1976 = vadd.f32 %v1427, %v1975
        %v1977 = vpop.f32.mrf.mxu0
        %v1978 = vpop.f32.mrf.mxu0
        %v1979 = vadd.f32 %v1427, %v1978
        %v1980 = vpop.f32.mrf.mxu0
        %1981 = vmatprep.mubr.bf16.mxu0 0
        %1982 = vmatmul.mubr.bf16.gmra.mxu0 %v1400
        %v1983 = vpop.f32.mrf.mxu0
        %v1984 = vadd.f32 %v1427, %v1983
        %v1985 = vpop.f32.mrf.mxu0
        %v1986 = vpop.f32.mrf.mxu0
        %v1987 = vadd.f32 %v1427, %v1986
        %v1988 = vpop.f32.mrf.mxu0
        %1989 = vmatprep.mubr.bf16.mxu0 0
        %1990 = vmatmul.mubr.bf16.gmra.mxu0 %v1401
        %v1991 = vpop.f32.mrf.mxu0
        %v1992 = vadd.f32 %v1427, %v1991
        %v1993 = vpop.f32.mrf.mxu0
        %v1994 = vpop.f32.mrf.mxu0
        %v1995 = vadd.f32 %v1427, %v1994
        %v1996 = vpop.f32.mrf.mxu0
        %1997 = vmatprep.mubr.bf16.mxu0 0
        %1998 = vmatmul.mubr.bf16.gmra.mxu0 %v1402
        %v1999 = vpop.f32.mrf.mxu0
        %v2000 = vadd.f32 %v1427, %v1999
        %v2001 = vpop.f32.mrf.mxu0
        %v2002 = vpop.f32.mrf.mxu0
        %v2003 = vadd.f32 %v1427, %v2002
        %v2004 = vpop.f32.mrf.mxu0
        %2005 = vmatprep.mubr.bf16.mxu0 0
        %2006 = vmatmul.mubr.bf16.gmra.mxu0 %v1403
        %v2007 = vpop.f32.mrf.mxu0
        %v2008 = vadd.f32 %v1427, %v2007
        %v2009 = vpop.f32.mrf.mxu0
        %v2010 = vpop.f32.mrf.mxu0
        %v2011 = vadd.f32 %v1427, %v2010
        %v2012 = vpop.f32.mrf.mxu0
        %2013 = vmatprep.mubr.bf16.mxu0 0
        %2014 = vmatmul.mubr.bf16.gmra.mxu0 %v1404
        %v2015 = vpop.f32.mrf.mxu0
        %v2016 = vadd.f32 %v1427, %v2015
        %v2017 = vpop.f32.mrf.mxu0
        %v2018 = vpop.f32.mrf.mxu0
        %v2019 = vadd.f32 %v1427, %v2018
        %v2020 = vpop.f32.mrf.mxu0
        %2021 = vmatprep.mubr.bf16.mxu0 0
        %2022 = vmatmul.mubr.bf16.gmra.mxu0 %v1405
        %v2023 = vpop.f32.mrf.mxu0
        %v2024 = vadd.f32 %v1427, %v2023
        %v2025 = vpop.f32.mrf.mxu0
        %v2026 = vpop.f32.mrf.mxu0
        %v2027 = vpop.f32.mrf.mxu0
        %2028 = vdwg.mxu0
        %vm2029 = vcmask 15360
        %2030 = vst.msk [vmem:[%s226] sm:$0xff] %vm2029, %v1512
        %2031 = vst.msk [vmem:[%s226 + $0x8] sm:$0xff] %vm2029, %v1515
        %2032 = vst.msk [vmem:[%s226 + $0x10] sm:$0xff] %vm2029, %v1520
        %2033 = vst.msk [vmem:[%s226 + $0x18] sm:$0xff] %vm2029, %v1523
        %2034 = vst.msk [vmem:[%s226 + $0x20] sm:$0xff] %vm2029, %v1528
        %2035 = vst.msk [vmem:[%s226 + $0x28] sm:$0xff] %vm2029, %v1531
        %2036 = vst.msk [vmem:[%s226 + $0x30] sm:$0xff] %vm2029, %v1536
        %2037 = vst.msk [vmem:[%s226 + $0x38] sm:$0xff] %vm2029, %v1539
        %2038 = vst.msk [vmem:[%s226 + $0x40] sm:$0xff] %vm2029, %v1544
        %2039 = vst.msk [vmem:[%s226 + $0x48] sm:$0xff] %vm2029, %v1547
        %2040 = vst.msk [vmem:[%s226 + $0x50] sm:$0xff] %vm2029, %v1552
        %2041 = vst.msk [vmem:[%s226 + $0x58] sm:$0xff] %vm2029, %v1555
        %2042 = vst.msk [vmem:[%s226 + $0x60] sm:$0xff] %vm2029, %v1560
        %2043 = vst.msk [vmem:[%s226 + $0x68] sm:$0xff] %vm2029, %v1563
        %2044 = vst.msk [vmem:[%s226 + $0x70] sm:$0xff] %vm2029, %v1568
        %2045 = vst.msk [vmem:[%s226 + $0x78] sm:$0xff] %vm2029, %v1571
        %2046 = vst.msk [vmem:[%s226 + $0x80] sm:$0xff] %vm2029, %v1576
        %2047 = vst.msk [vmem:[%s226 + $0x88] sm:$0xff] %vm2029, %v1579
        %2048 = vst.msk [vmem:[%s226 + $0x90] sm:$0xff] %vm2029, %v1584
        %2049 = vst.msk [vmem:[%s226 + $0x98] sm:$0xff] %vm2029, %v1587
        %2050 = vst.msk [vmem:[%s226 + $0xa0] sm:$0xff] %vm2029, %v1592
        %2051 = vst.msk [vmem:[%s226 + $0xa8] sm:$0xff] %vm2029, %v1595
        %2052 = vst.msk [vmem:[%s226 + $0xb0] sm:$0xff] %vm2029, %v1600
        %2053 = vst.msk [vmem:[%s226 + $0xb8] sm:$0xff] %vm2029, %v1603
        %2054 = vst.msk [vmem:[%s226 + $0xc0] sm:$0xff] %vm2029, %v1608
        %2055 = vst.msk [vmem:[%s226 + $0xc8] sm:$0xff] %vm2029, %v1611
        %2056 = vst.msk [vmem:[%s226 + $0xd0] sm:$0xff] %vm2029, %v1616
        %2057 = vst.msk [vmem:[%s226 + $0xd8] sm:$0xff] %vm2029, %v1619
        %2058 = vst.msk [vmem:[%s226 + $0xe0] sm:$0xff] %vm2029, %v1624
        %2059 = vst.msk [vmem:[%s226 + $0xe8] sm:$0xff] %vm2029, %v1627
        %2060 = vst.msk [vmem:[%s226 + $0xf0] sm:$0xff] %vm2029, %v1632
        %2061 = vst.msk [vmem:[%s226 + $0xf8] sm:$0xff] %vm2029, %v1635
        %2062 = vst.msk [vmem:[%s226 + $0x100] sm:$0xff] %vm2029, %v1640
        %2063 = vst.msk [vmem:[%s226 + $0x108] sm:$0xff] %vm2029, %v1643
        %2064 = vst.msk [vmem:[%s226 + $0x110] sm:$0xff] %vm2029, %v1648
        %2065 = vst.msk [vmem:[%s226 + $0x118] sm:$0xff] %vm2029, %v1651
        %2066 = vst.msk [vmem:[%s226 + $0x120] sm:$0xff] %vm2029, %v1656
        %2067 = vst.msk [vmem:[%s226 + $0x128] sm:$0xff] %vm2029, %v1659
        %2068 = vst.msk [vmem:[%s226 + $0x130] sm:$0xff] %vm2029, %v1664
        %2069 = vst.msk [vmem:[%s226 + $0x138] sm:$0xff] %vm2029, %v1667
        %2070 = vst.msk [vmem:[%s226 + $0x140] sm:$0xff] %vm2029, %v1672
        %2071 = vst.msk [vmem:[%s226 + $0x148] sm:$0xff] %vm2029, %v1675
        %2072 = vst.msk [vmem:[%s226 + $0x150] sm:$0xff] %vm2029, %v1680
        %2073 = vst.msk [vmem:[%s226 + $0x158] sm:$0xff] %vm2029, %v1683
        %2074 = vst.msk [vmem:[%s226 + $0x160] sm:$0xff] %vm2029, %v1688
        %2075 = vst.msk [vmem:[%s226 + $0x168] sm:$0xff] %vm2029, %v1691
        %2076 = vst.msk [vmem:[%s226 + $0x170] sm:$0xff] %vm2029, %v1696
        %2077 = vst.msk [vmem:[%s226 + $0x178] sm:$0xff] %vm2029, %v1699
        %2078 = vst.msk [vmem:[%s226 + $0x180] sm:$0xff] %vm2029, %v1704
        %2079 = vst.msk [vmem:[%s226 + $0x188] sm:$0xff] %vm2029, %v1707
        %2080 = vst.msk [vmem:[%s226 + $0x190] sm:$0xff] %vm2029, %v1712
        %2081 = vst.msk [vmem:[%s226 + $0x198] sm:$0xff] %vm2029, %v1715
        %2082 = vst.msk [vmem:[%s226 + $0x1a0] sm:$0xff] %vm2029, %v1720
        %2083 = vst.msk [vmem:[%s226 + $0x1a8] sm:$0xff] %vm2029, %v1723
        %2084 = vst.msk [vmem:[%s226 + $0x1b0] sm:$0xff] %vm2029, %v1728
        %2085 = vst.msk [vmem:[%s226 + $0x1b8] sm:$0xff] %vm2029, %v1731
        %2086 = vst.msk [vmem:[%s226 + $0x1c0] sm:$0xff] %vm2029, %v1736
        %2087 = vst.msk [vmem:[%s226 + $0x1c8] sm:$0xff] %vm2029, %v1739
        %2088 = vst.msk [vmem:[%s226 + $0x1d0] sm:$0xff] %vm2029, %v1744
        %2089 = vst.msk [vmem:[%s226 + $0x1d8] sm:$0xff] %vm2029, %v1747
        %2090 = vst.msk [vmem:[%s226 + $0x1e0] sm:$0xff] %vm2029, %v1752
        %2091 = vst.msk [vmem:[%s226 + $0x1e8] sm:$0xff] %vm2029, %v1755
        %2092 = vst.msk [vmem:[%s226 + $0x1f0] sm:$0xff] %vm2029, %v1760
        %2093 = vst.msk [vmem:[%s226 + $0x1f8] sm:$0xff] %vm2029, %v1763
        %2094 = vst.msk [vmem:[%s226 + $0x200] sm:$0xff] %vm2029, %v1768
        %2095 = vst.msk [vmem:[%s226 + $0x208] sm:$0xff] %vm2029, %v1771
        %2096 = vst.msk [vmem:[%s226 + $0x210] sm:$0xff] %vm2029, %v1776
        %2097 = vst.msk [vmem:[%s226 + $0x218] sm:$0xff] %vm2029, %v1779
        %2098 = vst.msk [vmem:[%s226 + $0x220] sm:$0xff] %vm2029, %v1784
        %2099 = vst.msk [vmem:[%s226 + $0x228] sm:$0xff] %vm2029, %v1787
        %2100 = vst.msk [vmem:[%s226 + $0x230] sm:$0xff] %vm2029, %v1792
        %2101 = vst.msk [vmem:[%s226 + $0x238] sm:$0xff] %vm2029, %v1795
        %2102 = vst.msk [vmem:[%s226 + $0x240] sm:$0xff] %vm2029, %v1800
        %2103 = vst.msk [vmem:[%s226 + $0x248] sm:$0xff] %vm2029, %v1803
        %2104 = vst.msk [vmem:[%s226 + $0x250] sm:$0xff] %vm2029, %v1808
        %2105 = vst.msk [vmem:[%s226 + $0x258] sm:$0xff] %vm2029, %v1811
        %2106 = vst.msk [vmem:[%s226 + $0x260] sm:$0xff] %vm2029, %v1816
        %2107 = vst.msk [vmem:[%s226 + $0x268] sm:$0xff] %vm2029, %v1819
        %2108 = vst.msk [vmem:[%s226 + $0x270] sm:$0xff] %vm2029, %v1824
        %2109 = vst.msk [vmem:[%s226 + $0x278] sm:$0xff] %vm2029, %v1827
        %2110 = vst.msk [vmem:[%s226 + $0x280] sm:$0xff] %vm2029, %v1832
        %2111 = vst.msk [vmem:[%s226 + $0x288] sm:$0xff] %vm2029, %v1835
        %2112 = vst.msk [vmem:[%s226 + $0x290] sm:$0xff] %vm2029, %v1840
        %2113 = vst.msk [vmem:[%s226 + $0x298] sm:$0xff] %vm2029, %v1843
        %2114 = vst.msk [vmem:[%s226 + $0x2a0] sm:$0xff] %vm2029, %v1848
        %2115 = vst.msk [vmem:[%s226 + $0x2a8] sm:$0xff] %vm2029, %v1851
        %2116 = vst.msk [vmem:[%s226 + $0x2b0] sm:$0xff] %vm2029, %v1856
        %2117 = vst.msk [vmem:[%s226 + $0x2b8] sm:$0xff] %vm2029, %v1859
        %2118 = vst.msk [vmem:[%s226 + $0x2c0] sm:$0xff] %vm2029, %v1864
        %2119 = vst.msk [vmem:[%s226 + $0x2c8] sm:$0xff] %vm2029, %v1867
        %2120 = vst.msk [vmem:[%s226 + $0x2d0] sm:$0xff] %vm2029, %v1872
        %2121 = vst.msk [vmem:[%s226 + $0x2d8] sm:$0xff] %vm2029, %v1875
        %2122 = vst.msk [vmem:[%s226 + $0x2e0] sm:$0xff] %vm2029, %v1880
        %2123 = vst.msk [vmem:[%s226 + $0x2e8] sm:$0xff] %vm2029, %v1883
        %2124 = vst.msk [vmem:[%s226 + $0x2f0] sm:$0xff] %vm2029, %v1888
        %2125 = vst.msk [vmem:[%s226 + $0x2f8] sm:$0xff] %vm2029, %v1891
        %2126 = vst.msk [vmem:[%s226 + $0x300] sm:$0xff] %vm2029, %v1896
        %2127 = vst.msk [vmem:[%s226 + $0x308] sm:$0xff] %vm2029, %v1899
        %2128 = vst.msk [vmem:[%s226 + $0x310] sm:$0xff] %vm2029, %v1904
        %2129 = vst.msk [vmem:[%s226 + $0x318] sm:$0xff] %vm2029, %v1907
        %2130 = vst.msk [vmem:[%s226 + $0x320] sm:$0xff] %vm2029, %v1912
        %2131 = vst.msk [vmem:[%s226 + $0x328] sm:$0xff] %vm2029, %v1915
        %2132 = vst.msk [vmem:[%s226 + $0x330] sm:$0xff] %vm2029, %v1920
        %2133 = vst.msk [vmem:[%s226 + $0x338] sm:$0xff] %vm2029, %v1923
        %2134 = vst.msk [vmem:[%s226 + $0x340] sm:$0xff] %vm2029, %v1928
        %2135 = vst.msk [vmem:[%s226 + $0x348] sm:$0xff] %vm2029, %v1931
        %2136 = vst.msk [vmem:[%s226 + $0x350] sm:$0xff] %vm2029, %v1936
        %2137 = vst.msk [vmem:[%s226 + $0x358] sm:$0xff] %vm2029, %v1939
        %2138 = vst.msk [vmem:[%s226 + $0x360] sm:$0xff] %vm2029, %v1944
        %2139 = vst.msk [vmem:[%s226 + $0x368] sm:$0xff] %vm2029, %v1947
        %2140 = vst.msk [vmem:[%s226 + $0x370] sm:$0xff] %vm2029, %v1952
        %2141 = vst.msk [vmem:[%s226 + $0x378] sm:$0xff] %vm2029, %v1955
        %2142 = vst.msk [vmem:[%s226 + $0x380] sm:$0xff] %vm2029, %v1960
        %2143 = vst.msk [vmem:[%s226 + $0x388] sm:$0xff] %vm2029, %v1963
        %2144 = vst.msk [vmem:[%s226 + $0x390] sm:$0xff] %vm2029, %v1968
        %2145 = vst.msk [vmem:[%s226 + $0x398] sm:$0xff] %vm2029, %v1971
        %2146 = vst.msk [vmem:[%s226 + $0x3a0] sm:$0xff] %vm2029, %v1976
        %2147 = vst.msk [vmem:[%s226 + $0x3a8] sm:$0xff] %vm2029, %v1979
        %2148 = vst.msk [vmem:[%s226 + $0x3b0] sm:$0xff] %vm2029, %v1984
        %2149 = vst.msk [vmem:[%s226 + $0x3b8] sm:$0xff] %vm2029, %v1987
        %2150 = vst.msk [vmem:[%s226 + $0x3c0] sm:$0xff] %vm2029, %v1992
        %2151 = vst.msk [vmem:[%s226 + $0x3c8] sm:$0xff] %vm2029, %v1995
        %2152 = vst.msk [vmem:[%s226 + $0x3d0] sm:$0xff] %vm2029, %v2000
        %2153 = vst.msk [vmem:[%s226 + $0x3d8] sm:$0xff] %vm2029, %v2003
        %2154 = vst.msk [vmem:[%s226 + $0x3e0] sm:$0xff] %vm2029, %v2008
        %2155 = vst.msk [vmem:[%s226 + $0x3e8] sm:$0xff] %vm2029, %v2011
        %2156 = vst.msk [vmem:[%s226 + $0x3f0] sm:$0xff] %vm2029, %v2016
        %2157 = vst.msk [vmem:[%s226 + $0x3f8] sm:$0xff] %vm2029, %v2019
        %2158 = vst.msk [vmem:[%s226 + $0x400] sm:$0xff] %vm2029, %v2024
        %s2159 = sand.u32 %s134, 1
        %s2160 = sand.u32 %s134, 1
        %s2161 = smul.addr %s2160, 1032
        %s2162 = scalar_lea.vmem [#allocation2], %s2161
        // Predicated region
        $region41: #{domain_discriminator.1} parent=39 // pred_check
          %p2163 = pneg %p144
        $region42: #{domain_discriminator.1} parent=39 // pred_check_branch
          %2165 = sbr.rel (%p2163) target = $region44
        $region43: #{domain_discriminator.1} parent=39 // pred_region
          %s2166 = smul.u32 129, %s16
          %s2167 = ssub.s32 257, %s2166
          %p2168 = scmp.lt.s32.totalorder %s2167, 129
          %s2169 = scalar_select %p2168, %s2167, 129
          %s2170 = smul.u32 128, %s2169
          %p2171 = scmp.ne.s32.totalorder 0, %s2170
          %s2172 = smul.addr %s2166, 8
          %s2173 = scalar_lea.vmem %s5, %s2172
          // Predicated region
          $region45: #{domain_discriminator.1} parent=43 // pred_check
            %p2174 = pneg %p2171
          $region46: #{domain_discriminator.1} parent=43 // pred_check_branch
            %2176 = sbr.rel (%p2174) target = $region48
          $region47: #{domain_discriminator.1} parent=43 // pred_region
            // Predicated region
            $region49: #{domain_discriminator.1} parent=47 // pred_check
              _
            $region50: #{domain_discriminator.1} parent=47 // pred_check_branch
              %2178 = sbr.rel (0) target = $region52
            $region51: #{domain_discriminator.1} parent=47 // pred_region
              // Predicated region
              $region71: #{domain_discriminator.1} parent=51 // pred_check
                _
              $region72: #{domain_discriminator.1} parent=51 // pred_check_branch
                %2354 = sbr.rel (0) target = $region74
              $region73: #{domain_discriminator.1} parent=51 // pred_region
                %s2355 = sshrl.u32 %s2169, 6
                // While loop
                $region75: #{domain_discriminator.1} parent=73 // loop_pre_header
                  _
                $region76: #{domain_discriminator.1} parent=73 // loop_header
                  %s2357 = sphi 0, %s2359
                  %p2358 = scmp.ge.s32.totalorder %s2357, %s2355
                  %s2362 = sphi 0, %s2495
                  %s2363 = sphi %s2162, %s2498
                  %s2364 = sphi %s2173, %s2499
                $region77: #{domain_discriminator.1} parent=73 // loop_header_branch
                  %2361 = sbr.rel (%p2358) target = $region81
                $region78: #{domain_discriminator.1} parent=73 // loop_body
                  %v2365 = vld [vmem:[%s2363] sm:$0xff]
                  %2366 = vst [vmem:[%s2364] sm:$0xff] %v2365
                  %v2367 = vld [vmem:[%s2363 + $0x8] sm:$0xff]
                  %2368 = vst [vmem:[%s2364 + $0x8] sm:$0xff] %v2367
                  %v2369 = vld [vmem:[%s2363 + $0x10] sm:$0xff]
                  %2370 = vst [vmem:[%s2364 + $0x10] sm:$0xff] %v2369
                  %v2371 = vld [vmem:[%s2363 + $0x18] sm:$0xff]
                  %2372 = vst [vmem:[%s2364 + $0x18] sm:$0xff] %v2371
                  %v2373 = vld [vmem:[%s2363 + $0x20] sm:$0xff]
                  %2374 = vst [vmem:[%s2364 + $0x20] sm:$0xff] %v2373
                  %v2375 = vld [vmem:[%s2363 + $0x28] sm:$0xff]
                  %2376 = vst [vmem:[%s2364 + $0x28] sm:$0xff] %v2375
                  %v2377 = vld [vmem:[%s2363 + $0x30] sm:$0xff]
                  %2378 = vst [vmem:[%s2364 + $0x30] sm:$0xff] %v2377
                  %v2379 = vld [vmem:[%s2363 + $0x38] sm:$0xff]
                  %2380 = vst [vmem:[%s2364 + $0x38] sm:$0xff] %v2379
                  %v2381 = vld [vmem:[%s2363 + $0x40] sm:$0xff]
                  %2382 = vst [vmem:[%s2364 + $0x40] sm:$0xff] %v2381
                  %v2383 = vld [vmem:[%s2363 + $0x48] sm:$0xff]
                  %2384 = vst [vmem:[%s2364 + $0x48] sm:$0xff] %v2383
                  %v2385 = vld [vmem:[%s2363 + $0x50] sm:$0xff]
                  %2386 = vst [vmem:[%s2364 + $0x50] sm:$0xff] %v2385
                  %v2387 = vld [vmem:[%s2363 + $0x58] sm:$0xff]
                  %2388 = vst [vmem:[%s2364 + $0x58] sm:$0xff] %v2387
                  %v2389 = vld [vmem:[%s2363 + $0x60] sm:$0xff]
                  %2390 = vst [vmem:[%s2364 + $0x60] sm:$0xff] %v2389
                  %v2391 = vld [vmem:[%s2363 + $0x68] sm:$0xff]
                  %2392 = vst [vmem:[%s2364 + $0x68] sm:$0xff] %v2391
                  %v2393 = vld [vmem:[%s2363 + $0x70] sm:$0xff]
                  %2394 = vst [vmem:[%s2364 + $0x70] sm:$0xff] %v2393
                  %v2395 = vld [vmem:[%s2363 + $0x78] sm:$0xff]
                  %2396 = vst [vmem:[%s2364 + $0x78] sm:$0xff] %v2395
                  %v2397 = vld [vmem:[%s2363 + $0x80] sm:$0xff]
                  %2398 = vst [vmem:[%s2364 + $0x80] sm:$0xff] %v2397
                  %v2399 = vld [vmem:[%s2363 + $0x88] sm:$0xff]
                  %2400 = vst [vmem:[%s2364 + $0x88] sm:$0xff] %v2399
                  %v2401 = vld [vmem:[%s2363 + $0x90] sm:$0xff]
                  %2402 = vst [vmem:[%s2364 + $0x90] sm:$0xff] %v2401
                  %v2403 = vld [vmem:[%s2363 + $0x98] sm:$0xff]
                  %2404 = vst [vmem:[%s2364 + $0x98] sm:$0xff] %v2403
                  %v2405 = vld [vmem:[%s2363 + $0xa0] sm:$0xff]
                  %2406 = vst [vmem:[%s2364 + $0xa0] sm:$0xff] %v2405
                  %v2407 = vld [vmem:[%s2363 + $0xa8] sm:$0xff]
                  %2408 = vst [vmem:[%s2364 + $0xa8] sm:$0xff] %v2407
                  %v2409 = vld [vmem:[%s2363 + $0xb0] sm:$0xff]
                  %2410 = vst [vmem:[%s2364 + $0xb0] sm:$0xff] %v2409
                  %v2411 = vld [vmem:[%s2363 + $0xb8] sm:$0xff]
                  %2412 = vst [vmem:[%s2364 + $0xb8] sm:$0xff] %v2411
                  %v2413 = vld [vmem:[%s2363 + $0xc0] sm:$0xff]
                  %2414 = vst [vmem:[%s2364 + $0xc0] sm:$0xff] %v2413
                  %v2415 = vld [vmem:[%s2363 + $0xc8] sm:$0xff]
                  %2416 = vst [vmem:[%s2364 + $0xc8] sm:$0xff] %v2415
                  %v2417 = vld [vmem:[%s2363 + $0xd0] sm:$0xff]
                  %2418 = vst [vmem:[%s2364 + $0xd0] sm:$0xff] %v2417
                  %v2419 = vld [vmem:[%s2363 + $0xd8] sm:$0xff]
                  %2420 = vst [vmem:[%s2364 + $0xd8] sm:$0xff] %v2419
                  %v2421 = vld [vmem:[%s2363 + $0xe0] sm:$0xff]
                  %2422 = vst [vmem:[%s2364 + $0xe0] sm:$0xff] %v2421
                  %v2423 = vld [vmem:[%s2363 + $0xe8] sm:$0xff]
                  %2424 = vst [vmem:[%s2364 + $0xe8] sm:$0xff] %v2423
                  %v2425 = vld [vmem:[%s2363 + $0xf0] sm:$0xff]
                  %2426 = vst [vmem:[%s2364 + $0xf0] sm:$0xff] %v2425
                  %v2427 = vld [vmem:[%s2363 + $0xf8] sm:$0xff]
                  %2428 = vst [vmem:[%s2364 + $0xf8] sm:$0xff] %v2427
                  %v2429 = vld [vmem:[%s2363 + $0x100] sm:$0xff]
                  %2430 = vst [vmem:[%s2364 + $0x100] sm:$0xff] %v2429
                  %v2431 = vld [vmem:[%s2363 + $0x108] sm:$0xff]
                  %2432 = vst [vmem:[%s2364 + $0x108] sm:$0xff] %v2431
                  %v2433 = vld [vmem:[%s2363 + $0x110] sm:$0xff]
                  %2434 = vst [vmem:[%s2364 + $0x110] sm:$0xff] %v2433
                  %v2435 = vld [vmem:[%s2363 + $0x118] sm:$0xff]
                  %2436 = vst [vmem:[%s2364 + $0x118] sm:$0xff] %v2435
                  %v2437 = vld [vmem:[%s2363 + $0x120] sm:$0xff]
                  %2438 = vst [vmem:[%s2364 + $0x120] sm:$0xff] %v2437
                  %v2439 = vld [vmem:[%s2363 + $0x128] sm:$0xff]
                  %2440 = vst [vmem:[%s2364 + $0x128] sm:$0xff] %v2439
                  %v2441 = vld [vmem:[%s2363 + $0x130] sm:$0xff]
                  %2442 = vst [vmem:[%s2364 + $0x130] sm:$0xff] %v2441
                  %v2443 = vld [vmem:[%s2363 + $0x138] sm:$0xff]
                  %2444 = vst [vmem:[%s2364 + $0x138] sm:$0xff] %v2443
                  %v2445 = vld [vmem:[%s2363 + $0x140] sm:$0xff]
                  %2446 = vst [vmem:[%s2364 + $0x140] sm:$0xff] %v2445
                  %v2447 = vld [vmem:[%s2363 + $0x148] sm:$0xff]
                  %2448 = vst [vmem:[%s2364 + $0x148] sm:$0xff] %v2447
                  %v2449 = vld [vmem:[%s2363 + $0x150] sm:$0xff]
                  %2450 = vst [vmem:[%s2364 + $0x150] sm:$0xff] %v2449
                  %v2451 = vld [vmem:[%s2363 + $0x158] sm:$0xff]
                  %2452 = vst [vmem:[%s2364 + $0x158] sm:$0xff] %v2451
                  %v2453 = vld [vmem:[%s2363 + $0x160] sm:$0xff]
                  %2454 = vst [vmem:[%s2364 + $0x160] sm:$0xff] %v2453
                  %v2455 = vld [vmem:[%s2363 + $0x168] sm:$0xff]
                  %2456 = vst [vmem:[%s2364 + $0x168] sm:$0xff] %v2455
                  %v2457 = vld [vmem:[%s2363 + $0x170] sm:$0xff]
                  %2458 = vst [vmem:[%s2364 + $0x170] sm:$0xff] %v2457
                  %v2459 = vld [vmem:[%s2363 + $0x178] sm:$0xff]
                  %2460 = vst [vmem:[%s2364 + $0x178] sm:$0xff] %v2459
                  %v2461 = vld [vmem:[%s2363 + $0x180] sm:$0xff]
                  %2462 = vst [vmem:[%s2364 + $0x180] sm:$0xff] %v2461
                  %v2463 = vld [vmem:[%s2363 + $0x188] sm:$0xff]
                  %2464 = vst [vmem:[%s2364 + $0x188] sm:$0xff] %v2463
                  %v2465 = vld [vmem:[%s2363 + $0x190] sm:$0xff]
                  %2466 = vst [vmem:[%s2364 + $0x190] sm:$0xff] %v2465
                  %v2467 = vld [vmem:[%s2363 + $0x198] sm:$0xff]
                  %2468 = vst [vmem:[%s2364 + $0x198] sm:$0xff] %v2467
                  %v2469 = vld [vmem:[%s2363 + $0x1a0] sm:$0xff]
                  %2470 = vst [vmem:[%s2364 + $0x1a0] sm:$0xff] %v2469
                  %v2471 = vld [vmem:[%s2363 + $0x1a8] sm:$0xff]
                  %2472 = vst [vmem:[%s2364 + $0x1a8] sm:$0xff] %v2471
                  %v2473 = vld [vmem:[%s2363 + $0x1b0] sm:$0xff]
                  %2474 = vst [vmem:[%s2364 + $0x1b0] sm:$0xff] %v2473
                  %v2475 = vld [vmem:[%s2363 + $0x1b8] sm:$0xff]
                  %2476 = vst [vmem:[%s2364 + $0x1b8] sm:$0xff] %v2475
                  %v2477 = vld [vmem:[%s2363 + $0x1c0] sm:$0xff]
                  %2478 = vst [vmem:[%s2364 + $0x1c0] sm:$0xff] %v2477
                  %v2479 = vld [vmem:[%s2363 + $0x1c8] sm:$0xff]
                  %2480 = vst [vmem:[%s2364 + $0x1c8] sm:$0xff] %v2479
                  %v2481 = vld [vmem:[%s2363 + $0x1d0] sm:$0xff]
                  %2482 = vst [vmem:[%s2364 + $0x1d0] sm:$0xff] %v2481
                  %v2483 = vld [vmem:[%s2363 + $0x1d8] sm:$0xff]
                  %2484 = vst [vmem:[%s2364 + $0x1d8] sm:$0xff] %v2483
                  %v2485 = vld [vmem:[%s2363 + $0x1e0] sm:$0xff]
                  %2486 = vst [vmem:[%s2364 + $0x1e0] sm:$0xff] %v2485
                  %v2487 = vld [vmem:[%s2363 + $0x1e8] sm:$0xff]
                  %2488 = vst [vmem:[%s2364 + $0x1e8] sm:$0xff] %v2487
                  %v2489 = vld [vmem:[%s2363 + $0x1f0] sm:$0xff]
                  %2490 = vst [vmem:[%s2364 + $0x1f0] sm:$0xff] %v2489
                  %v2491 = vld [vmem:[%s2363 + $0x1f8] sm:$0xff]
                  %2492 = vst [vmem:[%s2364 + $0x1f8] sm:$0xff] %v2491
                  %s2493 = sadd.s32 1, %s2362
                  %p2494 = scmp.ge.s32.totalorder %s2493, %s2355
                  %s2495 = scalar_select %p2494, 0, %s2493
                  %s2496 = smul.u32 %s2495, 512
                  %s2497 = smul.u32 %s2495, 512
                  %s2498 = scalar_lea.vmem %s2162, %s2496 [#allocation2]
                  %s2499 = scalar_lea.vmem %s2173, %s2497
                $region79: #{domain_discriminator.1} parent=73 // loop_footer
                  %s2359 = sadd.s32 %s2357, 1
                $region80: #{domain_discriminator.1} parent=73 // loop_footer_branch
                  %2356 = sbr.rel target = $region76
                $region81: #{domain_discriminator.1} parent=73 // loop_exit
                  _
                %s2500 = sshrl.u32 %s2169, 6
                %s2501 = sand.u32 %s2169, 63
                %s2502 = smul.u32 %s2500, 64
                %s2503 = smul.u32 8, %s2502
                %s2504 = scalar_lea.vmem %s2162, %s2503 [#allocation2]
                %s2505 = smul.u32 8, %s2502
                %s2506 = scalar_lea.vmem %s2173, %s2505
                // While loop
                $region82: #{domain_discriminator.1} parent=73 // loop_pre_header
                  _
                $region83: #{domain_discriminator.1} parent=73 // loop_header
                  %s2508 = sphi 0, %s2510
                  %p2509 = scmp.ge.s32.totalorder %s2508, %s2501
                  %s2513 = sphi 0, %s2520
                  %s2514 = sphi %s2504, %s2523
                  %s2515 = sphi %s2506, %s2524
                $region84: #{domain_discriminator.1} parent=73 // loop_header_branch
                  %2512 = sbr.rel (%p2509) target = $region88
                $region85: #{domain_discriminator.1} parent=73 // loop_body
                  %v2516 = vld [vmem:[%s2514] sm:$0xff]
                  %2517 = vst [vmem:[%s2515] sm:$0xff] %v2516
                  %s2518 = sadd.s32 1, %s2513
                  %p2519 = scmp.ge.s32.totalorder %s2518, %s2501
                  %s2520 = scalar_select %p2519, 0, %s2518
                  %s2521 = smul.u32 %s2520, 8
                  %s2522 = smul.u32 %s2520, 8
                  %s2523 = scalar_lea.vmem %s2504, %s2521 [#allocation2]
                  %s2524 = scalar_lea.vmem %s2506, %s2522
                $region86: #{domain_discriminator.1} parent=73 // loop_footer
                  %s2510 = sadd.s32 %s2508, 1
                $region87: #{domain_discriminator.1} parent=73 // loop_footer_branch
                  %2507 = sbr.rel target = $region83
                $region88: #{domain_discriminator.1} parent=73 // loop_exit
                  _
              $region74: #{domain_discriminator.1} parent=51 // pred_fallthru
                _
              // Predicated region
              $region89: #{domain_discriminator.1} parent=51 // pred_check
                _
              $region90: #{domain_discriminator.1} parent=51 // pred_check_branch
                %2526 = sbr.rel target = $region92
              $region91: #{domain_discriminator.1} parent=51 // pred_region
                _
              $region92: #{domain_discriminator.1} parent=51 // pred_fallthru
                _
            $region52: #{domain_discriminator.1} parent=47 // pred_fallthru
              _
            // Predicated region
            $region53: #{domain_discriminator.1} parent=47 // pred_check
              _
            $region54: #{domain_discriminator.1} parent=47 // pred_check_branch
              %2180 = sbr.rel target = $region56
            $region55: #{domain_discriminator.1} parent=47 // pred_region
              %s2182 = ssub.s32 256, 1
              %s2183 = sshrl.u32 %s2169, 6
              // While loop
              $region57: #{domain_discriminator.1} parent=55 // loop_pre_header
                _
              $region58: #{domain_discriminator.1} parent=55 // loop_header
                %s2185 = sphi 0, %s2187
                %p2186 = scmp.ge.s32.totalorder %s2185, %s2183
                %s2190 = sphi 0, %s2323
                %s2191 = sphi %s2162, %s2326
                %s2192 = sphi %s2173, %s2327
              $region59: #{domain_discriminator.1} parent=55 // loop_header_branch
                %2189 = sbr.rel (%p2186) target = $region63
              $region60: #{domain_discriminator.1} parent=55 // loop_body
                %v2193 = vld [vmem:[%s2191] sm:%s2182]
                %2194 = vst [vmem:[%s2192] sm:%s2182] %v2193
                %v2195 = vld [vmem:[%s2191 + $0x8] sm:%s2182]
                %2196 = vst [vmem:[%s2192 + $0x8] sm:%s2182] %v2195
                %v2197 = vld [vmem:[%s2191 + $0x10] sm:%s2182]
                %2198 = vst [vmem:[%s2192 + $0x10] sm:%s2182] %v2197
                %v2199 = vld [vmem:[%s2191 + $0x18] sm:%s2182]
                %2200 = vst [vmem:[%s2192 + $0x18] sm:%s2182] %v2199
                %v2201 = vld [vmem:[%s2191 + $0x20] sm:%s2182]
                %2202 = vst [vmem:[%s2192 + $0x20] sm:%s2182] %v2201
                %v2203 = vld [vmem:[%s2191 + $0x28] sm:%s2182]
                %2204 = vst [vmem:[%s2192 + $0x28] sm:%s2182] %v2203
                %v2205 = vld [vmem:[%s2191 + $0x30] sm:%s2182]
                %2206 = vst [vmem:[%s2192 + $0x30] sm:%s2182] %v2205
                %v2207 = vld [vmem:[%s2191 + $0x38] sm:%s2182]
                %2208 = vst [vmem:[%s2192 + $0x38] sm:%s2182] %v2207
                %v2209 = vld [vmem:[%s2191 + $0x40] sm:%s2182]
                %2210 = vst [vmem:[%s2192 + $0x40] sm:%s2182] %v2209
                %v2211 = vld [vmem:[%s2191 + $0x48] sm:%s2182]
                %2212 = vst [vmem:[%s2192 + $0x48] sm:%s2182] %v2211
                %v2213 = vld [vmem:[%s2191 + $0x50] sm:%s2182]
                %2214 = vst [vmem:[%s2192 + $0x50] sm:%s2182] %v2213
                %v2215 = vld [vmem:[%s2191 + $0x58] sm:%s2182]
                %2216 = vst [vmem:[%s2192 + $0x58] sm:%s2182] %v2215
                %v2217 = vld [vmem:[%s2191 + $0x60] sm:%s2182]
                %2218 = vst [vmem:[%s2192 + $0x60] sm:%s2182] %v2217
                %v2219 = vld [vmem:[%s2191 + $0x68] sm:%s2182]
                %2220 = vst [vmem:[%s2192 + $0x68] sm:%s2182] %v2219
                %v2221 = vld [vmem:[%s2191 + $0x70] sm:%s2182]
                %2222 = vst [vmem:[%s2192 + $0x70] sm:%s2182] %v2221
                %v2223 = vld [vmem:[%s2191 + $0x78] sm:%s2182]
                %2224 = vst [vmem:[%s2192 + $0x78] sm:%s2182] %v2223
                %v2225 = vld [vmem:[%s2191 + $0x80] sm:%s2182]
                %2226 = vst [vmem:[%s2192 + $0x80] sm:%s2182] %v2225
                %v2227 = vld [vmem:[%s2191 + $0x88] sm:%s2182]
                %2228 = vst [vmem:[%s2192 + $0x88] sm:%s2182] %v2227
                %v2229 = vld [vmem:[%s2191 + $0x90] sm:%s2182]
                %2230 = vst [vmem:[%s2192 + $0x90] sm:%s2182] %v2229
                %v2231 = vld [vmem:[%s2191 + $0x98] sm:%s2182]
                %2232 = vst [vmem:[%s2192 + $0x98] sm:%s2182] %v2231
                %v2233 = vld [vmem:[%s2191 + $0xa0] sm:%s2182]
                %2234 = vst [vmem:[%s2192 + $0xa0] sm:%s2182] %v2233
                %v2235 = vld [vmem:[%s2191 + $0xa8] sm:%s2182]
                %2236 = vst [vmem:[%s2192 + $0xa8] sm:%s2182] %v2235
                %v2237 = vld [vmem:[%s2191 + $0xb0] sm:%s2182]
                %2238 = vst [vmem:[%s2192 + $0xb0] sm:%s2182] %v2237
                %v2239 = vld [vmem:[%s2191 + $0xb8] sm:%s2182]
                %2240 = vst [vmem:[%s2192 + $0xb8] sm:%s2182] %v2239
                %v2241 = vld [vmem:[%s2191 + $0xc0] sm:%s2182]
                %2242 = vst [vmem:[%s2192 + $0xc0] sm:%s2182] %v2241
                %v2243 = vld [vmem:[%s2191 + $0xc8] sm:%s2182]
                %2244 = vst [vmem:[%s2192 + $0xc8] sm:%s2182] %v2243
                %v2245 = vld [vmem:[%s2191 + $0xd0] sm:%s2182]
                %2246 = vst [vmem:[%s2192 + $0xd0] sm:%s2182] %v2245
                %v2247 = vld [vmem:[%s2191 + $0xd8] sm:%s2182]
                %2248 = vst [vmem:[%s2192 + $0xd8] sm:%s2182] %v2247
                %v2249 = vld [vmem:[%s2191 + $0xe0] sm:%s2182]
                %2250 = vst [vmem:[%s2192 + $0xe0] sm:%s2182] %v2249
                %v2251 = vld [vmem:[%s2191 + $0xe8] sm:%s2182]
                %2252 = vst [vmem:[%s2192 + $0xe8] sm:%s2182] %v2251
                %v2253 = vld [vmem:[%s2191 + $0xf0] sm:%s2182]
                %2254 = vst [vmem:[%s2192 + $0xf0] sm:%s2182] %v2253
                %v2255 = vld [vmem:[%s2191 + $0xf8] sm:%s2182]
                %2256 = vst [vmem:[%s2192 + $0xf8] sm:%s2182] %v2255
                %v2257 = vld [vmem:[%s2191 + $0x100] sm:%s2182]
                %2258 = vst [vmem:[%s2192 + $0x100] sm:%s2182] %v2257
                %v2259 = vld [vmem:[%s2191 + $0x108] sm:%s2182]
                %2260 = vst [vmem:[%s2192 + $0x108] sm:%s2182] %v2259
                %v2261 = vld [vmem:[%s2191 + $0x110] sm:%s2182]
                %2262 = vst [vmem:[%s2192 + $0x110] sm:%s2182] %v2261
                %v2263 = vld [vmem:[%s2191 + $0x118] sm:%s2182]
                %2264 = vst [vmem:[%s2192 + $0x118] sm:%s2182] %v2263
                %v2265 = vld [vmem:[%s2191 + $0x120] sm:%s2182]
                %2266 = vst [vmem:[%s2192 + $0x120] sm:%s2182] %v2265
                %v2267 = vld [vmem:[%s2191 + $0x128] sm:%s2182]
                %2268 = vst [vmem:[%s2192 + $0x128] sm:%s2182] %v2267
                %v2269 = vld [vmem:[%s2191 + $0x130] sm:%s2182]
                %2270 = vst [vmem:[%s2192 + $0x130] sm:%s2182] %v2269
                %v2271 = vld [vmem:[%s2191 + $0x138] sm:%s2182]
                %2272 = vst [vmem:[%s2192 + $0x138] sm:%s2182] %v2271
                %v2273 = vld [vmem:[%s2191 + $0x140] sm:%s2182]
                %2274 = vst [vmem:[%s2192 + $0x140] sm:%s2182] %v2273
                %v2275 = vld [vmem:[%s2191 + $0x148] sm:%s2182]
                %2276 = vst [vmem:[%s2192 + $0x148] sm:%s2182] %v2275
                %v2277 = vld [vmem:[%s2191 + $0x150] sm:%s2182]
                %2278 = vst [vmem:[%s2192 + $0x150] sm:%s2182] %v2277
                %v2279 = vld [vmem:[%s2191 + $0x158] sm:%s2182]
                %2280 = vst [vmem:[%s2192 + $0x158] sm:%s2182] %v2279
                %v2281 = vld [vmem:[%s2191 + $0x160] sm:%s2182]
                %2282 = vst [vmem:[%s2192 + $0x160] sm:%s2182] %v2281
                %v2283 = vld [vmem:[%s2191 + $0x168] sm:%s2182]
                %2284 = vst [vmem:[%s2192 + $0x168] sm:%s2182] %v2283
                %v2285 = vld [vmem:[%s2191 + $0x170] sm:%s2182]
                %2286 = vst [vmem:[%s2192 + $0x170] sm:%s2182] %v2285
                %v2287 = vld [vmem:[%s2191 + $0x178] sm:%s2182]
                %2288 = vst [vmem:[%s2192 + $0x178] sm:%s2182] %v2287
                %v2289 = vld [vmem:[%s2191 + $0x180] sm:%s2182]
                %2290 = vst [vmem:[%s2192 + $0x180] sm:%s2182] %v2289
                %v2291 = vld [vmem:[%s2191 + $0x188] sm:%s2182]
                %2292 = vst [vmem:[%s2192 + $0x188] sm:%s2182] %v2291
                %v2293 = vld [vmem:[%s2191 + $0x190] sm:%s2182]
                %2294 = vst [vmem:[%s2192 + $0x190] sm:%s2182] %v2293
                %v2295 = vld [vmem:[%s2191 + $0x198] sm:%s2182]
                %2296 = vst [vmem:[%s2192 + $0x198] sm:%s2182] %v2295
                %v2297 = vld [vmem:[%s2191 + $0x1a0] sm:%s2182]
                %2298 = vst [vmem:[%s2192 + $0x1a0] sm:%s2182] %v2297
                %v2299 = vld [vmem:[%s2191 + $0x1a8] sm:%s2182]
                %2300 = vst [vmem:[%s2192 + $0x1a8] sm:%s2182] %v2299
                %v2301 = vld [vmem:[%s2191 + $0x1b0] sm:%s2182]
                %2302 = vst [vmem:[%s2192 + $0x1b0] sm:%s2182] %v2301
                %v2303 = vld [vmem:[%s2191 + $0x1b8] sm:%s2182]
                %2304 = vst [vmem:[%s2192 + $0x1b8] sm:%s2182] %v2303
                %v2305 = vld [vmem:[%s2191 + $0x1c0] sm:%s2182]
                %2306 = vst [vmem:[%s2192 + $0x1c0] sm:%s2182] %v2305
                %v2307 = vld [vmem:[%s2191 + $0x1c8] sm:%s2182]
                %2308 = vst [vmem:[%s2192 + $0x1c8] sm:%s2182] %v2307
                %v2309 = vld [vmem:[%s2191 + $0x1d0] sm:%s2182]
                %2310 = vst [vmem:[%s2192 + $0x1d0] sm:%s2182] %v2309
                %v2311 = vld [vmem:[%s2191 + $0x1d8] sm:%s2182]
                %2312 = vst [vmem:[%s2192 + $0x1d8] sm:%s2182] %v2311
                %v2313 = vld [vmem:[%s2191 + $0x1e0] sm:%s2182]
                %2314 = vst [vmem:[%s2192 + $0x1e0] sm:%s2182] %v2313
                %v2315 = vld [vmem:[%s2191 + $0x1e8] sm:%s2182]
                %2316 = vst [vmem:[%s2192 + $0x1e8] sm:%s2182] %v2315
                %v2317 = vld [vmem:[%s2191 + $0x1f0] sm:%s2182]
                %2318 = vst [vmem:[%s2192 + $0x1f0] sm:%s2182] %v2317
                %v2319 = vld [vmem:[%s2191 + $0x1f8] sm:%s2182]
                %2320 = vst [vmem:[%s2192 + $0x1f8] sm:%s2182] %v2319
                %s2321 = sadd.s32 1, %s2190
                %p2322 = scmp.ge.s32.totalorder %s2321, %s2183
                %s2323 = scalar_select %p2322, 0, %s2321
                %s2324 = smul.u32 %s2323, 512
                %s2325 = smul.u32 %s2323, 512
                %s2326 = scalar_lea.vmem %s2162, %s2324 [#allocation2]
                %s2327 = scalar_lea.vmem %s2173, %s2325
              $region61: #{domain_discriminator.1} parent=55 // loop_footer
                %s2187 = sadd.s32 %s2185, 1
              $region62: #{domain_discriminator.1} parent=55 // loop_footer_branch
                %2184 = sbr.rel target = $region58
              $region63: #{domain_discriminator.1} parent=55 // loop_exit
                _
              %s2328 = sshrl.u32 %s2169, 6
              %s2329 = sand.u32 %s2169, 63
              %s2330 = smul.u32 %s2328, 64
              %s2331 = smul.u32 8, %s2330
              %s2332 = scalar_lea.vmem %s2162, %s2331 [#allocation2]
              %s2333 = smul.u32 8, %s2330
              %s2334 = scalar_lea.vmem %s2173, %s2333
              // While loop
              $region64: #{domain_discriminator.1} parent=55 // loop_pre_header
                _
              $region65: #{domain_discriminator.1} parent=55 // loop_header
                %s2336 = sphi 0, %s2338
                %p2337 = scmp.ge.s32.totalorder %s2336, %s2329
                %s2341 = sphi 0, %s2348
                %s2342 = sphi %s2332, %s2351
                %s2343 = sphi %s2334, %s2352
              $region66: #{domain_discriminator.1} parent=55 // loop_header_branch
                %2340 = sbr.rel (%p2337) target = $region70
              $region67: #{domain_discriminator.1} parent=55 // loop_body
                %v2344 = vld [vmem:[%s2342] sm:%s2182]
                %2345 = vst [vmem:[%s2343] sm:%s2182] %v2344
                %s2346 = sadd.s32 1, %s2341
                %p2347 = scmp.ge.s32.totalorder %s2346, %s2329
                %s2348 = scalar_select %p2347, 0, %s2346
                %s2349 = smul.u32 %s2348, 8
                %s2350 = smul.u32 %s2348, 8
                %s2351 = scalar_lea.vmem %s2332, %s2349 [#allocation2]
                %s2352 = scalar_lea.vmem %s2334, %s2350
              $region68: #{domain_discriminator.1} parent=55 // loop_footer
                %s2338 = sadd.s32 %s2336, 1
              $region69: #{domain_discriminator.1} parent=55 // loop_footer_branch
                %2335 = sbr.rel target = $region65
              $region70: #{domain_discriminator.1} parent=55 // loop_exit
                _
            $region56: #{domain_discriminator.1} parent=47 // pred_fallthru
              _
          $region48: #{domain_discriminator.1} parent=43 // pred_fallthru
            _
          %2527 = vnop
        $region44: #{domain_discriminator.1} parent=39 // pred_fallthru
          _
      $region40: #{domain_discriminator.1} parent=5 // pred_fallthru
        _
      %p2528 = scmp.le.s32.totalorder 2, %s11
      // Predicated region
      $region93: #{domain_discriminator.1} parent=5 // pred_check
        %p2529 = pneg %p2528
      $region94: #{domain_discriminator.1} parent=5 // pred_check_branch
        %2531 = sbr.rel (%p2529) target = $region96
      $region95: #{domain_discriminator.1} parent=5 // pred_region
        %s2532 = ssub.s32 %s11, 2
        // Predicated region
        $region97: #{domain_discriminator.1} parent=95 // pred_check
          %p2533 = pneg %p150
        $region98: #{domain_discriminator.1} parent=95 // pred_check_branch
          %2535 = sbr.rel (%p2533) target = $region100
        $region99: #{domain_discriminator.1} parent=95 // pred_region
          %s2536 = sand.u32 %s135, 1
          %s2537 = sand.u32 %s135, 1
          %s2538 = smul.addr %s2537, 1032
          %s2539 = scalar_lea.vmem [#allocation2], %s2538
        $region100: #{domain_discriminator.1} parent=95 // pred_fallthru
          _
      $region96: #{domain_discriminator.1} parent=5 // pred_fallthru
        _
    $region6: #{domain_discriminator.1} parent=1 // loop_footer
      %s15 = sadd.s32 1, %s11
    $region7: #{domain_discriminator.1} parent=1 // loop_footer_branch
      %10 = sbr.rel target = $region3
    $region8: #{domain_discriminator.1} parent=1 // loop_exit
      _

</llo_original>
